<compile_context>
chip_gen: v5e
topology: v5e:2x2
jax: 0.10.0
libtpu: 0.0.40
codegen_flags: <defaults>
</compile_context>

<pallas_src>
import math

import jax
import jax.numpy as jnp
from jax.experimental import pallas as pl
from jax.experimental.pallas import tpu as pltpu  # noqa: F401  (kept for TPU backend)

# ----- small roberta-like config -----
VOCAB = 100
MAX_POS = 64
HIDDEN = 32
HEADS = 4
HEAD_DIM = HIDDEN // HEADS
FFN = 64
LAYERS = 2
N_CLASSES = 3
EPS = 1e-5


# ---------------- in-kernel helpers (traced, value-level) ----------------
def _layernorm(x, g, b, eps=EPS):
    mu = jnp.mean(x, axis=-1, keepdims=True)
    var = jnp.mean((x - mu) ** 2, axis=-1, keepdims=True)
    return (x - mu) * jax.lax.rsqrt(var + eps) * g + b


def _gelu_tanh(x):
    return 0.5 * x * (1.0 + jnp.tanh(0.7978845608028654 * (x + 0.044715 * x * x * x)))


# ---------------- fused encoder kernel (single invocation, no grid) --------
def _encoder_kernel(x_ref, bias_ref, emb_g_ref, emb_b_ref,
                    wqkv_ref, bqkv_ref, wo_ref, bo_ref,
                    ln1_g_ref, ln1_b_ref,
                    w1_ref, b1_ref, w2_ref, b2_ref,
                    ln2_g_ref, ln2_b_ref,
                    o_ref):
    B, S, D = x_ref.shape
    scale = 1.0 / math.sqrt(HEAD_DIM)

    # Embedding LayerNorm on the flattened (B*S, D) slab.
    x = x_ref[...].reshape(B * S, D)
    h = _layernorm(x, emb_g_ref[...], emb_b_ref[...])

    # Hoisted: additive key bias, (1,S)->(S,S) broadcast done ONCE per batch
    # element (reused by every layer and every head below).
    biases = [jnp.broadcast_to(bias_ref[b, :][None, :], (S, S)) for b in range(B)]

    # Statically unrolled layer loop — stacked weights stay VMEM-resident.
    for l in range(LAYERS):
        # Fused QKV projection on the whole (B*S, D) slab.
        qkv = jnp.dot(h, wqkv_ref[l], preferred_element_type=jnp.float32) + bqkv_ref[l]

        # Per-batch, per-head attention via static lane slices.
        ctx_rows = []
        for b in range(B):
            qkv_b = qkv[b * S:(b + 1) * S, :]
            heads = []
            for hd in range(HEADS):
                lo = hd * HEAD_DIM
                qh = qkv_b[:, lo:lo + HEAD_DIM]
                kh = qkv_b[:, HIDDEN + lo:HIDDEN + lo + HEAD_DIM]
                vh = qkv_b[:, 2 * HIDDEN + lo:2 * HIDDEN + lo + HEAD_DIM]
                s = jnp.einsum("qd,kd->qk", qh, kh,
                               preferred_element_type=jnp.float32) * scale + biases[b]
                m = jnp.max(s, axis=-1, keepdims=True)
                p = jnp.exp(s - m)
                denom = jnp.sum(p, axis=-1, keepdims=True)
                o = jnp.dot(p, vh, preferred_element_type=jnp.float32)
                heads.append(o * pl.reciprocal(denom, approx=True))
            ctx_rows.append(jnp.concatenate(heads, axis=-1))
        ctx = jnp.concatenate(ctx_rows, axis=0)                   # (B*S, D)

        # Output projection + residual + LN1 (on the full slab).
        attn = jnp.dot(ctx, wo_ref[l], preferred_element_type=jnp.float32) + bo_ref[l]
        h1 = _layernorm(attn + h, ln1_g_ref[l], ln1_b_ref[l])

        # FFN + residual + LN2 (on the full slab).
        f = jnp.dot(h1, w1_ref[l], preferred_element_type=jnp.float32) + b1_ref[l]
        f = _gelu_tanh(f)
        f = jnp.dot(f, w2_ref[l], preferred_element_type=jnp.float32) + b2_ref[l]
        h = _layernorm(f + h1, ln2_g_ref[l], ln2_b_ref[l])

    # Emit only the CLS row of each batch element: (B, D).
    cls = jnp.concatenate([h[b * S:b * S + 1, :] for b in range(B)], axis=0)
    o_ref[...] = cls


# ---------------- wrapper ----------------
def encoder_forward(params, x_emb, bias):
    """x_emb: (B, S, D) summed embeddings; bias: (B, S) additive key mask.

    Returns the CLS hidden state per batch element, shape (B, D).
    """
    B, S, D = x_emb.shape
    # No grid / no BlockSpecs: single invocation, every operand whole in VMEM.
    # (On v7x one could use grid=(B,) with dimension_semantics=("parallel",)
    # to split the two batch elements across the two TensorCores — profile.)
    return pl.pallas_call(
        _encoder_kernel,
        out_shape=jax.ShapeDtypeStruct((B, D), jnp.float32),
    )(x_emb, bias,
      params["emb_ln_g"], params["emb_ln_b"],
      params["wqkv"], params["bqkv"], params["wo"], params["bo"],
      params["ln1_g"], params["ln1_b"],
      params["w1"], params["b1"], params["w2"], params["b2"],
      params["ln2_g"], params["ln2_b"])


# ---------------- parameters (stacked per-layer weights) ----------------
def init_params(key):
    keys = iter(jax.random.split(key, 16))
    std = 0.02

    def nrm(shape):
        return std * jax.random.normal(next(keys), shape, dtype=jnp.float32)

    return {
        "word_emb": nrm((VOCAB, HIDDEN)),
        "pos_emb": nrm((MAX_POS, HIDDEN)),
        "type_emb": nrm((1, HIDDEN)),
        "emb_ln_g": jnp.ones((1, HIDDEN), jnp.float32),
        "emb_ln_b": jnp.zeros((1, HIDDEN), jnp.float32),
        # fused QKV weights: [LAYERS, D, 3D]
        "wqkv": nrm((LAYERS, HIDDEN, 3 * HIDDEN)),
        "bqkv": jnp.zeros((LAYERS, 1, 3 * HIDDEN), jnp.float32),
        "wo": nrm((LAYERS, HIDDEN, HIDDEN)),
        "bo": jnp.zeros((LAYERS, 1, HIDDEN), jnp.float32),
        "ln1_g": jnp.ones((LAYERS, 1, HIDDEN), jnp.float32),
        "ln1_b": jnp.zeros((LAYERS, 1, HIDDEN), jnp.float32),
        "w1": nrm((LAYERS, HIDDEN, FFN)),
        "b1": jnp.zeros((LAYERS, 1, FFN), jnp.float32),
        "w2": nrm((LAYERS, FFN, HIDDEN)),
        "b2": jnp.zeros((LAYERS, 1, HIDDEN), jnp.float32),
        "ln2_g": jnp.ones((LAYERS, 1, HIDDEN), jnp.float32),
        "ln2_b": jnp.zeros((LAYERS, 1, HIDDEN), jnp.float32),
        "fc_w": nrm((HIDDEN, N_CLASSES)),
        "fc_b": jnp.zeros((N_CLASSES,), jnp.float32),
    }


# ---------------- forward (SentimentClassifier.forward) ----------------
def sentiment_classifier_forward(params, input_ids, attention_mask):
    B, S = input_ids.shape

    # Mask -> additive key bias, computed ONCE in the wrapper: 0 keep / -1e9 pad.
    bias = (attention_mask.astype(jnp.float32) - 1.0) * 1e9      # (B, S)

    # Embeddings (gather stays in plain JAX); RoBERTa positions start at 2.
    positions = jnp.arange(S) + 2
    x = (jnp.take(params["word_emb"], input_ids, axis=0)
         + jnp.take(params["pos_emb"], positions, axis=0)[None, :, :]
         + params["type_emb"][0][None, None, :])                 # (B, S, D)

    # Fused encoder (embedding LN + all layers + CLS pooling) in one pallas_call.
    pooled = encoder_forward(params, x, bias)                    # (B, D)

    # self.drop(pooled) -> identity at inference
    logits = pooled @ params["fc_w"] + params["fc_b"]            # self.fc (plain JAX)
    return logits


if __name__ == "__main__":
    B, S = 2, 8
    key = jax.random.PRNGKey(0)
    k_ids, k_params = jax.random.split(key)
    input_ids = jax.random.randint(k_ids, (B, S), 0, VOCAB, dtype=jnp.int32)
    attention_mask = jnp.array([[1] * S, [1] * (S - 2) + [0] * 2], dtype=jnp.int32)

    params = init_params(k_params)
    logits = sentiment_classifier_forward(params, input_ids, attention_mask)
    jax.block_until_ready(logits)
    assert logits.shape == (B, N_CLASSES)
    assert bool(jnp.all(jnp.isfinite(logits)))
    print("KERNEL_OK")
</pallas_src>

<mosaic_0001>
module attributes {stable_mosaic.version = 11 : i64} {
  func.func @_encoder_kernel(%arg0: memref<2x8x32xf32, #tpu.memory_space<vmem>>, %arg1: memref<2x8xf32, #tpu.memory_space<vmem>>, %arg2: memref<1x32xf32, #tpu.memory_space<vmem>>, %arg3: memref<1x32xf32, #tpu.memory_space<vmem>>, %arg4: memref<2x32x96xf32, #tpu.memory_space<vmem>>, %arg5: memref<2x1x96xf32, #tpu.memory_space<vmem>>, %arg6: memref<2x32x32xf32, #tpu.memory_space<vmem>>, %arg7: memref<2x1x32xf32, #tpu.memory_space<vmem>>, %arg8: memref<2x1x32xf32, #tpu.memory_space<vmem>>, %arg9: memref<2x1x32xf32, #tpu.memory_space<vmem>>, %arg10: memref<2x32x64xf32, #tpu.memory_space<vmem>>, %arg11: memref<2x1x64xf32, #tpu.memory_space<vmem>>, %arg12: memref<2x64x32xf32, #tpu.memory_space<vmem>>, %arg13: memref<2x1x32xf32, #tpu.memory_space<vmem>>, %arg14: memref<2x1x32xf32, #tpu.memory_space<vmem>>, %arg15: memref<2x1x32xf32, #tpu.memory_space<vmem>>, %arg16: memref<2x32xf32, #tpu.memory_space<vmem>>) attributes {dimension_semantics = [], scalar_prefetch = 0 : i64, scratch_operands = 0 : i64, tpu.core_type = #tpu.core_type<tc>} {
    %c0 = arith.constant 0 : index
    %c0_0 = arith.constant 0 : index
    %c0_1 = arith.constant 0 : index
    %0 = vector.load %arg0[%c0, %c0_0, %c0_1] : memref<2x8x32xf32, #tpu.memory_space<vmem>>, vector<2x8x32xf32>
    %1 = vector.shape_cast %0 : vector<2x8x32xf32> to vector<16x32xf32>
    %c0_2 = arith.constant 0 : index
    %c0_3 = arith.constant 0 : index
    %2 = vector.load %arg2[%c0_2, %c0_3] : memref<1x32xf32, #tpu.memory_space<vmem>>, vector<1x32xf32>
    %c0_4 = arith.constant 0 : index
    %c0_5 = arith.constant 0 : index
    %3 = vector.load %arg3[%c0_4, %c0_5] : memref<1x32xf32, #tpu.memory_space<vmem>>, vector<1x32xf32>
    %cst = arith.constant dense<0.000000e+00> : vector<16xf32>
    %4 = vector.multi_reduction <add>, %1, %cst [1] : vector<16x32xf32> to vector<16xf32>
    %5 = vector.shape_cast %4 : vector<16xf32> to vector<16x1xf32>
    %cst_6 = arith.constant 3.200000e+01 : f32
    %6 = vector.broadcast %cst_6 : f32 to vector<16x1xf32>
    %7 = arith.divf %5, %6 : vector<16x1xf32>
    %8 = vector.broadcast %7 : vector<16x1xf32> to vector<16x32xf32>
    %9 = arith.subf %1, %8 : vector<16x32xf32>
    %10 = arith.mulf %9, %9 : vector<16x32xf32>
    %cst_7 = arith.constant dense<0.000000e+00> : vector<16xf32>
    %11 = vector.multi_reduction <add>, %10, %cst_7 [1] : vector<16x32xf32> to vector<16xf32>
    %12 = vector.shape_cast %11 : vector<16xf32> to vector<16x1xf32>
    %cst_8 = arith.constant 3.200000e+01 : f32
    %13 = vector.broadcast %cst_8 : f32 to vector<16x1xf32>
    %14 = arith.divf %12, %13 : vector<16x1xf32>
    %15 = vector.broadcast %7 : vector<16x1xf32> to vector<16x32xf32>
    %16 = arith.subf %1, %15 : vector<16x32xf32>
    %cst_9 = arith.constant 9.99999974E-6 : f32
    %17 = vector.broadcast %cst_9 : f32 to vector<16x1xf32>
    %18 = arith.addf %14, %17 : vector<16x1xf32>
    %19 = math.rsqrt %18 : vector<16x1xf32>
    %20 = vector.broadcast %19 : vector<16x1xf32> to vector<16x32xf32>
    %21 = arith.mulf %16, %20 : vector<16x32xf32>
    %22 = vector.broadcast %2 : vector<1x32xf32> to vector<16x32xf32>
    %23 = arith.mulf %21, %22 : vector<16x32xf32>
    %24 = vector.broadcast %3 : vector<1x32xf32> to vector<16x32xf32>
    %25 = arith.addf %23, %24 : vector<16x32xf32>
    %c0_10 = arith.constant 0 : index
    %c0_11 = arith.constant 0 : index
    %26 = vector.load %arg1[%c0_10, %c0_11] : memref<2x8xf32, #tpu.memory_space<vmem>>, vector<1x8xf32>
    %27 = vector.shape_cast %26 : vector<1x8xf32> to vector<8xf32>
    %28 = vector.shape_cast %27 : vector<8xf32> to vector<1x8xf32>
    %29 = vector.shape_cast %28 : vector<1x8xf32> to vector<1x8xf32>
    %30 = vector.broadcast %29 : vector<1x8xf32> to vector<8x8xf32>
    %c1 = arith.constant 1 : index
    %c0_12 = arith.constant 0 : index
    %31 = vector.load %arg1[%c1, %c0_12] : memref<2x8xf32, #tpu.memory_space<vmem>>, vector<1x8xf32>
    %32 = vector.shape_cast %31 : vector<1x8xf32> to vector<8xf32>
    %33 = vector.shape_cast %32 : vector<8xf32> to vector<1x8xf32>
    %34 = vector.shape_cast %33 : vector<1x8xf32> to vector<1x8xf32>
    %35 = vector.broadcast %34 : vector<1x8xf32> to vector<8x8xf32>
    %c0_13 = arith.constant 0 : index
    %c0_14 = arith.constant 0 : index
    %c0_15 = arith.constant 0 : index
    %36 = vector.load %arg4[%c0_13, %c0_14, %c0_15] : memref<2x32x96xf32, #tpu.memory_space<vmem>>, vector<1x32x96xf32>
    %37 = vector.shape_cast %36 : vector<1x32x96xf32> to vector<32x96xf32>
    %cst_16 = arith.constant dense<0.000000e+00> : vector<16x96xf32>
    %38 = tpu.matmul %25, %37, %cst_16 {dimension_numbers = #tpu.dot_dimension_numbers<[1], [0], [0], [1], [0, 0, 1, 1], [], []>} : vector<16x32xf32>, vector<32x96xf32>, vector<16x96xf32> -> vector<16x96xf32>
    %c0_17 = arith.constant 0 : index
    %c0_18 = arith.constant 0 : index
    %c0_19 = arith.constant 0 : index
    %39 = vector.load %arg5[%c0_17, %c0_18, %c0_19] : memref<2x1x96xf32, #tpu.memory_space<vmem>>, vector<1x1x96xf32>
    %40 = vector.shape_cast %39 : vector<1x1x96xf32> to vector<1x96xf32>
    %41 = vector.broadcast %40 : vector<1x96xf32> to vector<16x96xf32>
    %42 = arith.addf %38, %41 : vector<16x96xf32>
    %43 = vector.extract_strided_slice %42 {offsets = [0, 0], sizes = [8, 96], strides = [1, 1]} : vector<16x96xf32> to vector<8x96xf32>
    %44 = vector.extract_strided_slice %43 {offsets = [0, 0], sizes = [8, 8], strides = [1, 1]} : vector<8x96xf32> to vector<8x8xf32>
    %45 = vector.extract_strided_slice %43 {offsets = [0, 32], sizes = [8, 8], strides = [1, 1]} : vector<8x96xf32> to vector<8x8xf32>
    %46 = vector.extract_strided_slice %43 {offsets = [0, 64], sizes = [8, 8], strides = [1, 1]} : vector<8x96xf32> to vector<8x8xf32>
    "tpu.trace_start"() <{level = 10 : i32, message = "qd,kd->qk"}> : () -> ()
    %cst_20 = arith.constant dense<0.000000e+00> : vector<8x8xf32>
    %47 = tpu.matmul %44, %45, %cst_20 {dimension_numbers = #tpu.dot_dimension_numbers<[1], [1], [0], [0], [0, 0, 1, 0], [], []>} : vector<8x8xf32>, vector<8x8xf32>, vector<8x8xf32> -> vector<8x8xf32>
    "tpu.trace_stop"() : () -> ()
    %cst_21 = arith.constant 0.353553385 : f32
    %48 = vector.broadcast %cst_21 : f32 to vector<8x8xf32>
    %49 = arith.mulf %47, %48 : vector<8x8xf32>
    %50 = arith.addf %49, %30 : vector<8x8xf32>
    %cst_22 = arith.constant dense<0xFF800000> : vector<8xf32>
    %51 = vector.multi_reduction <maximumf>, %50, %cst_22 [1] : vector<8x8xf32> to vector<8xf32>
    %52 = vector.shape_cast %51 : vector<8xf32> to vector<8x1xf32>
    %53 = vector.broadcast %52 : vector<8x1xf32> to vector<8x8xf32>
    %54 = arith.subf %50, %53 : vector<8x8xf32>
    %55 = math.exp %54 : vector<8x8xf32>
    %cst_23 = arith.constant dense<0.000000e+00> : vector<8xf32>
    %56 = vector.multi_reduction <add>, %55, %cst_23 [1] : vector<8x8xf32> to vector<8xf32>
    %57 = vector.shape_cast %56 : vector<8xf32> to vector<8x1xf32>
    %cst_24 = arith.constant dense<0.000000e+00> : vector<8x8xf32>
    %58 = tpu.matmul %55, %46, %cst_24 {dimension_numbers = #tpu.dot_dimension_numbers<[1], [0], [0], [1], [0, 0, 1, 1], [], []>} : vector<8x8xf32>, vector<8x8xf32>, vector<8x8xf32> -> vector<8x8xf32>
    %59 = tpu.reciprocal %57 {approx = true} : vector<8x1xf32> -> vector<8x1xf32>
    %60 = vector.broadcast %59 : vector<8x1xf32> to vector<8x8xf32>
    %61 = arith.mulf %58, %60 : vector<8x8xf32>
    %62 = vector.extract_strided_slice %43 {offsets = [0, 8], sizes = [8, 8], strides = [1, 1]} : vector<8x96xf32> to vector<8x8xf32>
    %63 = vector.extract_strided_slice %43 {offsets = [0, 40], sizes = [8, 8], strides = [1, 1]} : vector<8x96xf32> to vector<8x8xf32>
    %64 = vector.extract_strided_slice %43 {offsets = [0, 72], sizes = [8, 8], strides = [1, 1]} : vector<8x96xf32> to vector<8x8xf32>
    "tpu.trace_start"() <{level = 10 : i32, message = "qd,kd->qk"}> : () -> ()
    %cst_25 = arith.constant dense<0.000000e+00> : vector<8x8xf32>
    %65 = tpu.matmul %62, %63, %cst_25 {dimension_numbers = #tpu.dot_dimension_numbers<[1], [1], [0], [0], [0, 0, 1, 0], [], []>} : vector<8x8xf32>, vector<8x8xf32>, vector<8x8xf32> -> vector<8x8xf32>
    "tpu.trace_stop"() : () -> ()
    %cst_26 = arith.constant 0.353553385 : f32
    %66 = vector.broadcast %cst_26 : f32 to vector<8x8xf32>
    %67 = arith.mulf %65, %66 : vector<8x8xf32>
    %68 = arith.addf %67, %30 : vector<8x8xf32>
    %cst_27 = arith.constant dense<0xFF800000> : vector<8xf32>
    %69 = vector.multi_reduction <maximumf>, %68, %cst_27 [1] : vector<8x8xf32> to vector<8xf32>
    %70 = vector.shape_cast %69 : vector<8xf32> to vector<8x1xf32>
    %71 = vector.broadcast %70 : vector<8x1xf32> to vector<8x8xf32>
    %72 = arith.subf %68, %71 : vector<8x8xf32>
    %73 = math.exp %72 : vector<8x8xf32>
    %cst_28 = arith.constant dense<0.000000e+00> : vector<8xf32>
    %74 = vector.multi_reduction <add>, %73, %cst_28 [1] : vector<8x8xf32> to vector<8xf32>
    %75 = vector.shape_cast %74 : vector<8xf32> to vector<8x1xf32>
    %cst_29 = arith.constant dense<0.000000e+00> : vector<8x8xf32>
    %76 = tpu.matmul %73, %64, %cst_29 {dimension_numbers = #tpu.dot_dimension_numbers<[1], [0], [0], [1], [0, 0, 1, 1], [], []>} : vector<8x8xf32>, vector<8x8xf32>, vector<8x8xf32> -> vector<8x8xf32>
    %77 = tpu.reciprocal %75 {approx = true} : vector<8x1xf32> -> vector<8x1xf32>
    %78 = vector.broadcast %77 : vector<8x1xf32> to vector<8x8xf32>
    %79 = arith.mulf %76, %78 : vector<8x8xf32>
    %80 = vector.extract_strided_slice %43 {offsets = [0, 16], sizes = [8, 8], strides = [1, 1]} : vector<8x96xf32> to vector<8x8xf32>
    %81 = vector.extract_strided_slice %43 {offsets = [0, 48], sizes = [8, 8], strides = [1, 1]} : vector<8x96xf32> to vector<8x8xf32>
    %82 = vector.extract_strided_slice %43 {offsets = [0, 80], sizes = [8, 8], strides = [1, 1]} : vector<8x96xf32> to vector<8x8xf32>
    "tpu.trace_start"() <{level = 10 : i32, message = "qd,kd->qk"}> : () -> ()
    %cst_30 = arith.constant dense<0.000000e+00> : vector<8x8xf32>
    %83 = tpu.matmul %80, %81, %cst_30 {dimension_numbers = #tpu.dot_dimension_numbers<[1], [1], [0], [0], [0, 0, 1, 0], [], []>} : vector<8x8xf32>, vector<8x8xf32>, vector<8x8xf32> -> vector<8x8xf32>
    "tpu.trace_stop"() : () -> ()
    %cst_31 = arith.constant 0.353553385 : f32
    %84 = vector.broadcast %cst_31 : f32 to vector<8x8xf32>
    %85 = arith.mulf %83, %84 : vector<8x8xf32>
    %86 = arith.addf %85, %30 : vector<8x8xf32>
    %cst_32 = arith.constant dense<0xFF800000> : vector<8xf32>
    %87 = vector.multi_reduction <maximumf>, %86, %cst_32 [1] : vector<8x8xf32> to vector<8xf32>
    %88 = vector.shape_cast %87 : vector<8xf32> to vector<8x1xf32>
    %89 = vector.broadcast %88 : vector<8x1xf32> to vector<8x8xf32>
    %90 = arith.subf %86, %89 : vector<8x8xf32>
    %91 = math.exp %90 : vector<8x8xf32>
    %cst_33 = arith.constant dense<0.000000e+00> : vector<8xf32>
    %92 = vector.multi_reduction <add>, %91, %cst_33 [1] : vector<8x8xf32> to vector<8xf32>
    %93 = vector.shape_cast %92 : vector<8xf32> to vector<8x1xf32>
    %cst_34 = arith.constant dense<0.000000e+00> : vector<8x8xf32>
    %94 = tpu.matmul %91, %82, %cst_34 {dimension_numbers = #tpu.dot_dimension_numbers<[1], [0], [0], [1], [0, 0, 1, 1], [], []>} : vector<8x8xf32>, vector<8x8xf32>, vector<8x8xf32> -> vector<8x8xf32>
    %95 = tpu.reciprocal %93 {approx = true} : vector<8x1xf32> -> vector<8x1xf32>
    %96 = vector.broadcast %95 : vector<8x1xf32> to vector<8x8xf32>
    %97 = arith.mulf %94, %96 : vector<8x8xf32>
    %98 = vector.extract_strided_slice %43 {offsets = [0, 24], sizes = [8, 8], strides = [1, 1]} : vector<8x96xf32> to vector<8x8xf32>
    %99 = vector.extract_strided_slice %43 {offsets = [0, 56], sizes = [8, 8], strides = [1, 1]} : vector<8x96xf32> to vector<8x8xf32>
    %100 = vector.extract_strided_slice %43 {offsets = [0, 88], sizes = [8, 8], strides = [1, 1]} : vector<8x96xf32> to vector<8x8xf32>
    "tpu.trace_start"() <{level = 10 : i32, message = "qd,kd->qk"}> : () -> ()
    %cst_35 = arith.constant dense<0.000000e+00> : vector<8x8xf32>
    %101 = tpu.matmul %98, %99, %cst_35 {dimension_numbers = #tpu.dot_dimension_numbers<[1], [1], [0], [0], [0, 0, 1, 0], [], []>} : vector<8x8xf32>, vector<8x8xf32>, vector<8x8xf32> -> vector<8x8xf32>
    "tpu.trace_stop"() : () -> ()
    %cst_36 = arith.constant 0.353553385 : f32
    %102 = vector.broadcast %cst_36 : f32 to vector<8x8xf32>
    %103 = arith.mulf %101, %102 : vector<8x8xf32>
    %104 = arith.addf %103, %30 : vector<8x8xf32>
    %cst_37 = arith.constant dense<0xFF800000> : vector<8xf32>
    %105 = vector.multi_reduction <maximumf>, %104, %cst_37 [1] : vector<8x8xf32> to vector<8xf32>
    %106 = vector.shape_cast %105 : vector<8xf32> to vector<8x1xf32>
    %107 = vector.broadcast %106 : vector<8x1xf32> to vector<8x8xf32>
    %108 = arith.subf %104, %107 : vector<8x8xf32>
    %109 = math.exp %108 : vector<8x8xf32>
    %cst_38 = arith.constant dense<0.000000e+00> : vector<8xf32>
    %110 = vector.multi_reduction <add>, %109, %cst_38 [1] : vector<8x8xf32> to vector<8xf32>
    %111 = vector.shape_cast %110 : vector<8xf32> to vector<8x1xf32>
    %cst_39 = arith.constant dense<0.000000e+00> : vector<8x8xf32>
    %112 = tpu.matmul %109, %100, %cst_39 {dimension_numbers = #tpu.dot_dimension_numbers<[1], [0], [0], [1], [0, 0, 1, 1], [], []>} : vector<8x8xf32>, vector<8x8xf32>, vector<8x8xf32> -> vector<8x8xf32>
    %113 = tpu.reciprocal %111 {approx = true} : vector<8x1xf32> -> vector<8x1xf32>
    %114 = vector.broadcast %113 : vector<8x1xf32> to vector<8x8xf32>
    %115 = arith.mulf %112, %114 : vector<8x8xf32>
    %116 = tpu.concatenate %61, %79, %97, %115 in 1 : vector<8x8xf32>, vector<8x8xf32>, vector<8x8xf32>, vector<8x8xf32> -> vector<8x32xf32>
    %117 = vector.extract_strided_slice %42 {offsets = [8, 0], sizes = [8, 96], strides = [1, 1]} : vector<16x96xf32> to vector<8x96xf32>
    %118 = vector.extract_strided_slice %117 {offsets = [0, 0], sizes = [8, 8], strides = [1, 1]} : vector<8x96xf32> to vector<8x8xf32>
    %119 = vector.extract_strided_slice %117 {offsets = [0, 32], sizes = [8, 8], strides = [1, 1]} : vector<8x96xf32> to vector<8x8xf32>
    %120 = vector.extract_strided_slice %117 {offsets = [0, 64], sizes = [8, 8], strides = [1, 1]} : vector<8x96xf32> to vector<8x8xf32>
    "tpu.trace_start"() <{level = 10 : i32, message = "qd,kd->qk"}> : () -> ()
    %cst_40 = arith.constant dense<0.000000e+00> : vector<8x8xf32>
    %121 = tpu.matmul %118, %119, %cst_40 {dimension_numbers = #tpu.dot_dimension_numbers<[1], [1], [0], [0], [0, 0, 1, 0], [], []>} : vector<8x8xf32>, vector<8x8xf32>, vector<8x8xf32> -> vector<8x8xf32>
    "tpu.trace_stop"() : () -> ()
    %cst_41 = arith.constant 0.353553385 : f32
    %122 = vector.broadcast %cst_41 : f32 to vector<8x8xf32>
    %123 = arith.mulf %121, %122 : vector<8x8xf32>
    %124 = arith.addf %123, %35 : vector<8x8xf32>
    %cst_42 = arith.constant dense<0xFF800000> : vector<8xf32>
    %125 = vector.multi_reduction <maximumf>, %124, %cst_42 [1] : vector<8x8xf32> to vector<8xf32>
    %126 = vector.shape_cast %125 : vector<8xf32> to vector<8x1xf32>
    %127 = vector.broadcast %126 : vector<8x1xf32> to vector<8x8xf32>
    %128 = arith.subf %124, %127 : vector<8x8xf32>
    %129 = math.exp %128 : vector<8x8xf32>
    %cst_43 = arith.constant dense<0.000000e+00> : vector<8xf32>
    %130 = vector.multi_reduction <add>, %129, %cst_43 [1] : vector<8x8xf32> to vector<8xf32>
    %131 = vector.shape_cast %130 : vector<8xf32> to vector<8x1xf32>
    %cst_44 = arith.constant dense<0.000000e+00> : vector<8x8xf32>
    %132 = tpu.matmul %129, %120, %cst_44 {dimension_numbers = #tpu.dot_dimension_numbers<[1], [0], [0], [1], [0, 0, 1, 1], [], []>} : vector<8x8xf32>, vector<8x8xf32>, vector<8x8xf32> -> vector<8x8xf32>
    %133 = tpu.reciprocal %131 {approx = true} : vector<8x1xf32> -> vector<8x1xf32>
    %134 = vector.broadcast %133 : vector<8x1xf32> to vector<8x8xf32>
    %135 = arith.mulf %132, %134 : vector<8x8xf32>
    %136 = vector.extract_strided_slice %117 {offsets = [0, 8], sizes = [8, 8], strides = [1, 1]} : vector<8x96xf32> to vector<8x8xf32>
    %137 = vector.extract_strided_slice %117 {offsets = [0, 40], sizes = [8, 8], strides = [1, 1]} : vector<8x96xf32> to vector<8x8xf32>
    %138 = vector.extract_strided_slice %117 {offsets = [0, 72], sizes = [8, 8], strides = [1, 1]} : vector<8x96xf32> to vector<8x8xf32>
    "tpu.trace_start"() <{level = 10 : i32, message = "qd,kd->qk"}> : () -> ()
    %cst_45 = arith.constant dense<0.000000e+00> : vector<8x8xf32>
    %139 = tpu.matmul %136, %137, %cst_45 {dimension_numbers = #tpu.dot_dimension_numbers<[1], [1], [0], [0], [0, 0, 1, 0], [], []>} : vector<8x8xf32>, vector<8x8xf32>, vector<8x8xf32> -> vector<8x8xf32>
    "tpu.trace_stop"() : () -> ()
    %cst_46 = arith.constant 0.353553385 : f32
    %140 = vector.broadcast %cst_46 : f32 to vector<8x8xf32>
    %141 = arith.mulf %139, %140 : vector<8x8xf32>
    %142 = arith.addf %141, %35 : vector<8x8xf32>
    %cst_47 = arith.constant dense<0xFF800000> : vector<8xf32>
    %143 = vector.multi_reduction <maximumf>, %142, %cst_47 [1] : vector<8x8xf32> to vector<8xf32>
    %144 = vector.shape_cast %143 : vector<8xf32> to vector<8x1xf32>
    %145 = vector.broadcast %144 : vector<8x1xf32> to vector<8x8xf32>
    %146 = arith.subf %142, %145 : vector<8x8xf32>
    %147 = math.exp %146 : vector<8x8xf32>
    %cst_48 = arith.constant dense<0.000000e+00> : vector<8xf32>
    %148 = vector.multi_reduction <add>, %147, %cst_48 [1] : vector<8x8xf32> to vector<8xf32>
    %149 = vector.shape_cast %148 : vector<8xf32> to vector<8x1xf32>
    %cst_49 = arith.constant dense<0.000000e+00> : vector<8x8xf32>
    %150 = tpu.matmul %147, %138, %cst_49 {dimension_numbers = #tpu.dot_dimension_numbers<[1], [0], [0], [1], [0, 0, 1, 1], [], []>} : vector<8x8xf32>, vector<8x8xf32>, vector<8x8xf32> -> vector<8x8xf32>
    %151 = tpu.reciprocal %149 {approx = true} : vector<8x1xf32> -> vector<8x1xf32>
    %152 = vector.broadcast %151 : vector<8x1xf32> to vector<8x8xf32>
    %153 = arith.mulf %150, %152 : vector<8x8xf32>
    %154 = vector.extract_strided_slice %117 {offsets = [0, 16], sizes = [8, 8], strides = [1, 1]} : vector<8x96xf32> to vector<8x8xf32>
    %155 = vector.extract_strided_slice %117 {offsets = [0, 48], sizes = [8, 8], strides = [1, 1]} : vector<8x96xf32> to vector<8x8xf32>
    %156 = vector.extract_strided_slice %117 {offsets = [0, 80], sizes = [8, 8], strides = [1, 1]} : vector<8x96xf32> to vector<8x8xf32>
    "tpu.trace_start"() <{level = 10 : i32, message = "qd,kd->qk"}> : () -> ()
    %cst_50 = arith.constant dense<0.000000e+00> : vector<8x8xf32>
    %157 = tpu.matmul %154, %155, %cst_50 {dimension_numbers = #tpu.dot_dimension_numbers<[1], [1], [0], [0], [0, 0, 1, 0], [], []>} : vector<8x8xf32>, vector<8x8xf32>, vector<8x8xf32> -> vector<8x8xf32>
    "tpu.trace_stop"() : () -> ()
    %cst_51 = arith.constant 0.353553385 : f32
    %158 = vector.broadcast %cst_51 : f32 to vector<8x8xf32>
    %159 = arith.mulf %157, %158 : vector<8x8xf32>
    %160 = arith.addf %159, %35 : vector<8x8xf32>
    %cst_52 = arith.constant dense<0xFF800000> : vector<8xf32>
    %161 = vector.multi_reduction <maximumf>, %160, %cst_52 [1] : vector<8x8xf32> to vector<8xf32>
    %162 = vector.shape_cast %161 : vector<8xf32> to vector<8x1xf32>
    %163 = vector.broadcast %162 : vector<8x1xf32> to vector<8x8xf32>
    %164 = arith.subf %160, %163 : vector<8x8xf32>
    %165 = math.exp %164 : vector<8x8xf32>
    %cst_53 = arith.constant dense<0.000000e+00> : vector<8xf32>
    %166 = vector.multi_reduction <add>, %165, %cst_53 [1] : vector<8x8xf32> to vector<8xf32>
    %167 = vector.shape_cast %166 : vector<8xf32> to vector<8x1xf32>
    %cst_54 = arith.constant dense<0.000000e+00> : vector<8x8xf32>
    %168 = tpu.matmul %165, %156, %cst_54 {dimension_numbers = #tpu.dot_dimension_numbers<[1], [0], [0], [1], [0, 0, 1, 1], [], []>} : vector<8x8xf32>, vector<8x8xf32>, vector<8x8xf32> -> vector<8x8xf32>
    %169 = tpu.reciprocal %167 {approx = true} : vector<8x1xf32> -> vector<8x1xf32>
    %170 = vector.broadcast %169 : vector<8x1xf32> to vector<8x8xf32>
    %171 = arith.mulf %168, %170 : vector<8x8xf32>
    %172 = vector.extract_strided_slice %117 {offsets = [0, 24], sizes = [8, 8], strides = [1, 1]} : vector<8x96xf32> to vector<8x8xf32>
    %173 = vector.extract_strided_slice %117 {offsets = [0, 56], sizes = [8, 8], strides = [1, 1]} : vector<8x96xf32> to vector<8x8xf32>
    %174 = vector.extract_strided_slice %117 {offsets = [0, 88], sizes = [8, 8], strides = [1, 1]} : vector<8x96xf32> to vector<8x8xf32>
    "tpu.trace_start"() <{level = 10 : i32, message = "qd,kd->qk"}> : () -> ()
    %cst_55 = arith.constant dense<0.000000e+00> : vector<8x8xf32>
    %175 = tpu.matmul %172, %173, %cst_55 {dimension_numbers = #tpu.dot_dimension_numbers<[1], [1], [0], [0], [0, 0, 1, 0], [], []>} : vector<8x8xf32>, vector<8x8xf32>, vector<8x8xf32> -> vector<8x8xf32>
    "tpu.trace_stop"() : () -> ()
    %cst_56 = arith.constant 0.353553385 : f32
    %176 = vector.broadcast %cst_56 : f32 to vector<8x8xf32>
    %177 = arith.mulf %175, %176 : vector<8x8xf32>
    %178 = arith.addf %177, %35 : vector<8x8xf32>
    %cst_57 = arith.constant dense<0xFF800000> : vector<8xf32>
    %179 = vector.multi_reduction <maximumf>, %178, %cst_57 [1] : vector<8x8xf32> to vector<8xf32>
    %180 = vector.shape_cast %179 : vector<8xf32> to vector<8x1xf32>
    %181 = vector.broadcast %180 : vector<8x1xf32> to vector<8x8xf32>
    %182 = arith.subf %178, %181 : vector<8x8xf32>
    %183 = math.exp %182 : vector<8x8xf32>
    %cst_58 = arith.constant dense<0.000000e+00> : vector<8xf32>
    %184 = vector.multi_reduction <add>, %183, %cst_58 [1] : vector<8x8xf32> to vector<8xf32>
    %185 = vector.shape_cast %184 : vector<8xf32> to vector<8x1xf32>
    %cst_59 = arith.constant dense<0.000000e+00> : vector<8x8xf32>
    %186 = tpu.matmul %183, %174, %cst_59 {dimension_numbers = #tpu.dot_dimension_numbers<[1], [0], [0], [1], [0, 0, 1, 1], [], []>} : vector<8x8xf32>, vector<8x8xf32>, vector<8x8xf32> -> vector<8x8xf32>
    %187 = tpu.reciprocal %185 {approx = true} : vector<8x1xf32> -> vector<8x1xf32>
    %188 = vector.broadcast %187 : vector<8x1xf32> to vector<8x8xf32>
    %189 = arith.mulf %186, %188 : vector<8x8xf32>
    %190 = tpu.concatenate %135, %153, %171, %189 in 1 : vector<8x8xf32>, vector<8x8xf32>, vector<8x8xf32>, vector<8x8xf32> -> vector<8x32xf32>
    %191 = tpu.concatenate %116, %190 in 0 : vector<8x32xf32>, vector<8x32xf32> -> vector<16x32xf32>
    %c0_60 = arith.constant 0 : index
    %c0_61 = arith.constant 0 : index
    %c0_62 = arith.constant 0 : index
    %192 = vector.load %arg6[%c0_60, %c0_61, %c0_62] : memref<2x32x32xf32, #tpu.memory_space<vmem>>, vector<1x32x32xf32>
    %193 = vector.shape_cast %192 : vector<1x32x32xf32> to vector<32x32xf32>
    %cst_63 = arith.constant dense<0.000000e+00> : vector<16x32xf32>
    %194 = tpu.matmul %191, %193, %cst_63 {dimension_numbers = #tpu.dot_dimension_numbers<[1], [0], [0], [1], [0, 0, 1, 1], [], []>} : vector<16x32xf32>, vector<32x32xf32>, vector<16x32xf32> -> vector<16x32xf32>
    %c0_64 = arith.constant 0 : index
    %c0_65 = arith.constant 0 : index
    %c0_66 = arith.constant 0 : index
    %195 = vector.load %arg7[%c0_64, %c0_65, %c0_66] : memref<2x1x32xf32, #tpu.memory_space<vmem>>, vector<1x1x32xf32>
    %196 = vector.shape_cast %195 : vector<1x1x32xf32> to vector<1x32xf32>
    %197 = vector.broadcast %196 : vector<1x32xf32> to vector<16x32xf32>
    %198 = arith.addf %194, %197 : vector<16x32xf32>
    %199 = arith.addf %198, %25 : vector<16x32xf32>
    %c0_67 = arith.constant 0 : index
    %c0_68 = arith.constant 0 : index
    %c0_69 = arith.constant 0 : index
    %200 = vector.load %arg8[%c0_67, %c0_68, %c0_69] : memref<2x1x32xf32, #tpu.memory_space<vmem>>, vector<1x1x32xf32>
    %201 = vector.shape_cast %200 : vector<1x1x32xf32> to vector<1x32xf32>
    %c0_70 = arith.constant 0 : index
    %c0_71 = arith.constant 0 : index
    %c0_72 = arith.constant 0 : index
    %202 = vector.load %arg9[%c0_70, %c0_71, %c0_72] : memref<2x1x32xf32, #tpu.memory_space<vmem>>, vector<1x1x32xf32>
    %203 = vector.shape_cast %202 : vector<1x1x32xf32> to vector<1x32xf32>
    %cst_73 = arith.constant dense<0.000000e+00> : vector<16xf32>
    %204 = vector.multi_reduction <add>, %199, %cst_73 [1] : vector<16x32xf32> to vector<16xf32>
    %205 = vector.shape_cast %204 : vector<16xf32> to vector<16x1xf32>
    %cst_74 = arith.constant 3.200000e+01 : f32
    %206 = vector.broadcast %cst_74 : f32 to vector<16x1xf32>
    %207 = arith.divf %205, %206 : vector<16x1xf32>
    %208 = vector.broadcast %207 : vector<16x1xf32> to vector<16x32xf32>
    %209 = arith.subf %199, %208 : vector<16x32xf32>
    %210 = arith.mulf %209, %209 : vector<16x32xf32>
    %cst_75 = arith.constant dense<0.000000e+00> : vector<16xf32>
    %211 = vector.multi_reduction <add>, %210, %cst_75 [1] : vector<16x32xf32> to vector<16xf32>
    %212 = vector.shape_cast %211 : vector<16xf32> to vector<16x1xf32>
    %cst_76 = arith.constant 3.200000e+01 : f32
    %213 = vector.broadcast %cst_76 : f32 to vector<16x1xf32>
    %214 = arith.divf %212, %213 : vector<16x1xf32>
    %215 = vector.broadcast %207 : vector<16x1xf32> to vector<16x32xf32>
    %216 = arith.subf %199, %215 : vector<16x32xf32>
    %cst_77 = arith.constant 9.99999974E-6 : f32
    %217 = vector.broadcast %cst_77 : f32 to vector<16x1xf32>
    %218 = arith.addf %214, %217 : vector<16x1xf32>
    %219 = math.rsqrt %218 : vector<16x1xf32>
    %220 = vector.broadcast %219 : vector<16x1xf32> to vector<16x32xf32>
    %221 = arith.mulf %216, %220 : vector<16x32xf32>
    %222 = vector.broadcast %201 : vector<1x32xf32> to vector<16x32xf32>
    %223 = arith.mulf %221, %222 : vector<16x32xf32>
    %224 = vector.broadcast %203 : vector<1x32xf32> to vector<16x32xf32>
    %225 = arith.addf %223, %224 : vector<16x32xf32>
    %c0_78 = arith.constant 0 : index
    %c0_79 = arith.constant 0 : index
    %c0_80 = arith.constant 0 : index
    %226 = vector.load %arg10[%c0_78, %c0_79, %c0_80] : memref<2x32x64xf32, #tpu.memory_space<vmem>>, vector<1x32x64xf32>
    %227 = vector.shape_cast %226 : vector<1x32x64xf32> to vector<32x64xf32>
    %cst_81 = arith.constant dense<0.000000e+00> : vector<16x64xf32>
    %228 = tpu.matmul %225, %227, %cst_81 {dimension_numbers = #tpu.dot_dimension_numbers<[1], [0], [0], [1], [0, 0, 1, 1], [], []>} : vector<16x32xf32>, vector<32x64xf32>, vector<16x64xf32> -> vector<16x64xf32>
    %c0_82 = arith.constant 0 : index
    %c0_83 = arith.constant 0 : index
    %c0_84 = arith.constant 0 : index
    %229 = vector.load %arg11[%c0_82, %c0_83, %c0_84] : memref<2x1x64xf32, #tpu.memory_space<vmem>>, vector<1x1x64xf32>
    %230 = vector.shape_cast %229 : vector<1x1x64xf32> to vector<1x64xf32>
    %231 = vector.broadcast %230 : vector<1x64xf32> to vector<16x64xf32>
    %232 = arith.addf %228, %231 : vector<16x64xf32>
    %cst_85 = arith.constant 5.000000e-01 : f32
    %233 = vector.broadcast %cst_85 : f32 to vector<16x64xf32>
    %234 = arith.mulf %233, %232 : vector<16x64xf32>
    %cst_86 = arith.constant 4.471500e-02 : f32
    %235 = vector.broadcast %cst_86 : f32 to vector<16x64xf32>
    %236 = arith.mulf %235, %232 : vector<16x64xf32>
    %237 = arith.mulf %236, %232 : vector<16x64xf32>
    %238 = arith.mulf %237, %232 : vector<16x64xf32>
    %239 = arith.addf %232, %238 : vector<16x64xf32>
    %cst_87 = arith.constant 0.797884583 : f32
    %240 = vector.broadcast %cst_87 : f32 to vector<16x64xf32>
    %241 = arith.mulf %240, %239 : vector<16x64xf32>
    %242 = math.tanh %241 : vector<16x64xf32>
    %cst_88 = arith.constant 1.000000e+00 : f32
    %243 = vector.broadcast %cst_88 : f32 to vector<16x64xf32>
    %244 = arith.addf %243, %242 : vector<16x64xf32>
    %245 = arith.mulf %234, %244 : vector<16x64xf32>
    %c0_89 = arith.constant 0 : index
    %c0_90 = arith.constant 0 : index
    %c0_91 = arith.constant 0 : index
    %246 = vector.load %arg12[%c0_89, %c0_90, %c0_91] : memref<2x64x32xf32, #tpu.memory_space<vmem>>, vector<1x64x32xf32>
    %247 = vector.shape_cast %246 : vector<1x64x32xf32> to vector<64x32xf32>
    %cst_92 = arith.constant dense<0.000000e+00> : vector<16x32xf32>
    %248 = tpu.matmul %245, %247, %cst_92 {dimension_numbers = #tpu.dot_dimension_numbers<[1], [0], [0], [1], [0, 0, 1, 1], [], []>} : vector<16x64xf32>, vector<64x32xf32>, vector<16x32xf32> -> vector<16x32xf32>
    %c0_93 = arith.constant 0 : index
    %c0_94 = arith.constant 0 : index
    %c0_95 = arith.constant 0 : index
    %249 = vector.load %arg13[%c0_93, %c0_94, %c0_95] : memref<2x1x32xf32, #tpu.memory_space<vmem>>, vector<1x1x32xf32>
    %250 = vector.shape_cast %249 : vector<1x1x32xf32> to vector<1x32xf32>
    %251 = vector.broadcast %250 : vector<1x32xf32> to vector<16x32xf32>
    %252 = arith.addf %248, %251 : vector<16x32xf32>
    %253 = arith.addf %252, %225 : vector<16x32xf32>
    %c0_96 = arith.constant 0 : index
    %c0_97 = arith.constant 0 : index
    %c0_98 = arith.constant 0 : index
    %254 = vector.load %arg14[%c0_96, %c0_97, %c0_98] : memref<2x1x32xf32, #tpu.memory_space<vmem>>, vector<1x1x32xf32>
    %255 = vector.shape_cast %254 : vector<1x1x32xf32> to vector<1x32xf32>
    %c0_99 = arith.constant 0 : index
    %c0_100 = arith.constant 0 : index
    %c0_101 = arith.constant 0 : index
    %256 = vector.load %arg15[%c0_99, %c0_100, %c0_101] : memref<2x1x32xf32, #tpu.memory_space<vmem>>, vector<1x1x32xf32>
    %257 = vector.shape_cast %256 : vector<1x1x32xf32> to vector<1x32xf32>
    %cst_102 = arith.constant dense<0.000000e+00> : vector<16xf32>
    %258 = vector.multi_reduction <add>, %253, %cst_102 [1] : vector<16x32xf32> to vector<16xf32>
    %259 = vector.shape_cast %258 : vector<16xf32> to vector<16x1xf32>
    %cst_103 = arith.constant 3.200000e+01 : f32
    %260 = vector.broadcast %cst_103 : f32 to vector<16x1xf32>
    %261 = arith.divf %259, %260 : vector<16x1xf32>
    %262 = vector.broadcast %261 : vector<16x1xf32> to vector<16x32xf32>
    %263 = arith.subf %253, %262 : vector<16x32xf32>
    %264 = arith.mulf %263, %263 : vector<16x32xf32>
    %cst_104 = arith.constant dense<0.000000e+00> : vector<16xf32>
    %265 = vector.multi_reduction <add>, %264, %cst_104 [1] : vector<16x32xf32> to vector<16xf32>
    %266 = vector.shape_cast %265 : vector<16xf32> to vector<16x1xf32>
    %cst_105 = arith.constant 3.200000e+01 : f32
    %267 = vector.broadcast %cst_105 : f32 to vector<16x1xf32>
    %268 = arith.divf %266, %267 : vector<16x1xf32>
    %269 = vector.broadcast %261 : vector<16x1xf32> to vector<16x32xf32>
    %270 = arith.subf %253, %269 : vector<16x32xf32>
    %cst_106 = arith.constant 9.99999974E-6 : f32
    %271 = vector.broadcast %cst_106 : f32 to vector<16x1xf32>
    %272 = arith.addf %268, %271 : vector<16x1xf32>
    %273 = math.rsqrt %272 : vector<16x1xf32>
    %274 = vector.broadcast %273 : vector<16x1xf32> to vector<16x32xf32>
    %275 = arith.mulf %270, %274 : vector<16x32xf32>
    %276 = vector.broadcast %255 : vector<1x32xf32> to vector<16x32xf32>
    %277 = arith.mulf %275, %276 : vector<16x32xf32>
    %278 = vector.broadcast %257 : vector<1x32xf32> to vector<16x32xf32>
    %279 = arith.addf %277, %278 : vector<16x32xf32>
    %c1_107 = arith.constant 1 : index
    %c0_108 = arith.constant 0 : index
    %c0_109 = arith.constant 0 : index
    %280 = vector.load %arg4[%c1_107, %c0_108, %c0_109] : memref<2x32x96xf32, #tpu.memory_space<vmem>>, vector<1x32x96xf32>
    %281 = vector.shape_cast %280 : vector<1x32x96xf32> to vector<32x96xf32>
    %cst_110 = arith.constant dense<0.000000e+00> : vector<16x96xf32>
    %282 = tpu.matmul %279, %281, %cst_110 {dimension_numbers = #tpu.dot_dimension_numbers<[1], [0], [0], [1], [0, 0, 1, 1], [], []>} : vector<16x32xf32>, vector<32x96xf32>, vector<16x96xf32> -> vector<16x96xf32>
    %c1_111 = arith.constant 1 : index
    %c0_112 = arith.constant 0 : index
    %c0_113 = arith.constant 0 : index
    %283 = vector.load %arg5[%c1_111, %c0_112, %c0_113] : memref<2x1x96xf32, #tpu.memory_space<vmem>>, vector<1x1x96xf32>
    %284 = vector.shape_cast %283 : vector<1x1x96xf32> to vector<1x96xf32>
    %285 = vector.broadcast %284 : vector<1x96xf32> to vector<16x96xf32>
    %286 = arith.addf %282, %285 : vector<16x96xf32>
    %287 = vector.extract_strided_slice %286 {offsets = [0, 0], sizes = [8, 96], strides = [1, 1]} : vector<16x96xf32> to vector<8x96xf32>
    %288 = vector.extract_strided_slice %287 {offsets = [0, 0], sizes = [8, 8], strides = [1, 1]} : vector<8x96xf32> to vector<8x8xf32>
    %289 = vector.extract_strided_slice %287 {offsets = [0, 32], sizes = [8, 8], strides = [1, 1]} : vector<8x96xf32> to vector<8x8xf32>
    %290 = vector.extract_strided_slice %287 {offsets = [0, 64], sizes = [8, 8], strides = [1, 1]} : vector<8x96xf32> to vector<8x8xf32>
    "tpu.trace_start"() <{level = 10 : i32, message = "qd,kd->qk"}> : () -> ()
    %cst_114 = arith.constant dense<0.000000e+00> : vector<8x8xf32>
    %291 = tpu.matmul %288, %289, %cst_114 {dimension_numbers = #tpu.dot_dimension_numbers<[1], [1], [0], [0], [0, 0, 1, 0], [], []>} : vector<8x8xf32>, vector<8x8xf32>, vector<8x8xf32> -> vector<8x8xf32>
    "tpu.trace_stop"() : () -> ()
    %cst_115 = arith.constant 0.353553385 : f32
    %292 = vector.broadcast %cst_115 : f32 to vector<8x8xf32>
    %293 = arith.mulf %291, %292 : vector<8x8xf32>
    %294 = arith.addf %293, %30 : vector<8x8xf32>
    %cst_116 = arith.constant dense<0xFF800000> : vector<8xf32>
    %295 = vector.multi_reduction <maximumf>, %294, %cst_116 [1] : vector<8x8xf32> to vector<8xf32>
    %296 = vector.shape_cast %295 : vector<8xf32> to vector<8x1xf32>
    %297 = vector.broadcast %296 : vector<8x1xf32> to vector<8x8xf32>
    %298 = arith.subf %294, %297 : vector<8x8xf32>
    %299 = math.exp %298 : vector<8x8xf32>
    %cst_117 = arith.constant dense<0.000000e+00> : vector<8xf32>
    %300 = vector.multi_reduction <add>, %299, %cst_117 [1] : vector<8x8xf32> to vector<8xf32>
    %301 = vector.shape_cast %300 : vector<8xf32> to vector<8x1xf32>
    %cst_118 = arith.constant dense<0.000000e+00> : vector<8x8xf32>
    %302 = tpu.matmul %299, %290, %cst_118 {dimension_numbers = #tpu.dot_dimension_numbers<[1], [0], [0], [1], [0, 0, 1, 1], [], []>} : vector<8x8xf32>, vector<8x8xf32>, vector<8x8xf32> -> vector<8x8xf32>
    %303 = tpu.reciprocal %301 {approx = true} : vector<8x1xf32> -> vector<8x1xf32>
    %304 = vector.broadcast %303 : vector<8x1xf32> to vector<8x8xf32>
    %305 = arith.mulf %302, %304 : vector<8x8xf32>
    %306 = vector.extract_strided_slice %287 {offsets = [0, 8], sizes = [8, 8], strides = [1, 1]} : vector<8x96xf32> to vector<8x8xf32>
    %307 = vector.extract_strided_slice %287 {offsets = [0, 40], sizes = [8, 8], strides = [1, 1]} : vector<8x96xf32> to vector<8x8xf32>
    %308 = vector.extract_strided_slice %287 {offsets = [0, 72], sizes = [8, 8], strides = [1, 1]} : vector<8x96xf32> to vector<8x8xf32>
    "tpu.trace_start"() <{level = 10 : i32, message = "qd,kd->qk"}> : () -> ()
    %cst_119 = arith.constant dense<0.000000e+00> : vector<8x8xf32>
    %309 = tpu.matmul %306, %307, %cst_119 {dimension_numbers = #tpu.dot_dimension_numbers<[1], [1], [0], [0], [0, 0, 1, 0], [], []>} : vector<8x8xf32>, vector<8x8xf32>, vector<8x8xf32> -> vector<8x8xf32>
    "tpu.trace_stop"() : () -> ()
    %cst_120 = arith.constant 0.353553385 : f32
    %310 = vector.broadcast %cst_120 : f32 to vector<8x8xf32>
    %311 = arith.mulf %309, %310 : vector<8x8xf32>
    %312 = arith.addf %311, %30 : vector<8x8xf32>
    %cst_121 = arith.constant dense<0xFF800000> : vector<8xf32>
    %313 = vector.multi_reduction <maximumf>, %312, %cst_121 [1] : vector<8x8xf32> to vector<8xf32>
    %314 = vector.shape_cast %313 : vector<8xf32> to vector<8x1xf32>
    %315 = vector.broadcast %314 : vector<8x1xf32> to vector<8x8xf32>
    %316 = arith.subf %312, %315 : vector<8x8xf32>
    %317 = math.exp %316 : vector<8x8xf32>
    %cst_122 = arith.constant dense<0.000000e+00> : vector<8xf32>
    %318 = vector.multi_reduction <add>, %317, %cst_122 [1] : vector<8x8xf32> to vector<8xf32>
    %319 = vector.shape_cast %318 : vector<8xf32> to vector<8x1xf32>
    %cst_123 = arith.constant dense<0.000000e+00> : vector<8x8xf32>
    %320 = tpu.matmul %317, %308, %cst_123 {dimension_numbers = #tpu.dot_dimension_numbers<[1], [0], [0], [1], [0, 0, 1, 1], [], []>} : vector<8x8xf32>, vector<8x8xf32>, vector<8x8xf32> -> vector<8x8xf32>
    %321 = tpu.reciprocal %319 {approx = true} : vector<8x1xf32> -> vector<8x1xf32>
    %322 = vector.broadcast %321 : vector<8x1xf32> to vector<8x8xf32>
    %323 = arith.mulf %320, %322 : vector<8x8xf32>
    %324 = vector.extract_strided_slice %287 {offsets = [0, 16], sizes = [8, 8], strides = [1, 1]} : vector<8x96xf32> to vector<8x8xf32>
    %325 = vector.extract_strided_slice %287 {offsets = [0, 48], sizes = [8, 8], strides = [1, 1]} : vector<8x96xf32> to vector<8x8xf32>
    %326 = vector.extract_strided_slice %287 {offsets = [0, 80], sizes = [8, 8], strides = [1, 1]} : vector<8x96xf32> to vector<8x8xf32>
    "tpu.trace_start"() <{level = 10 : i32, message = "qd,kd->qk"}> : () -> ()
    %cst_124 = arith.constant dense<0.000000e+00> : vector<8x8xf32>
    %327 = tpu.matmul %324, %325, %cst_124 {dimension_numbers = #tpu.dot_dimension_numbers<[1], [1], [0], [0], [0, 0, 1, 0], [], []>} : vector<8x8xf32>, vector<8x8xf32>, vector<8x8xf32> -> vector<8x8xf32>
    "tpu.trace_stop"() : () -> ()
    %cst_125 = arith.constant 0.353553385 : f32
    %328 = vector.broadcast %cst_125 : f32 to vector<8x8xf32>
    %329 = arith.mulf %327, %328 : vector<8x8xf32>
    %330 = arith.addf %329, %30 : vector<8x8xf32>
    %cst_126 = arith.constant dense<0xFF800000> : vector<8xf32>
    %331 = vector.multi_reduction <maximumf>, %330, %cst_126 [1] : vector<8x8xf32> to vector<8xf32>
    %332 = vector.shape_cast %331 : vector<8xf32> to vector<8x1xf32>
    %333 = vector.broadcast %332 : vector<8x1xf32> to vector<8x8xf32>
    %334 = arith.subf %330, %333 : vector<8x8xf32>
    %335 = math.exp %334 : vector<8x8xf32>
    %cst_127 = arith.constant dense<0.000000e+00> : vector<8xf32>
    %336 = vector.multi_reduction <add>, %335, %cst_127 [1] : vector<8x8xf32> to vector<8xf32>
    %337 = vector.shape_cast %336 : vector<8xf32> to vector<8x1xf32>
    %cst_128 = arith.constant dense<0.000000e+00> : vector<8x8xf32>
    %338 = tpu.matmul %335, %326, %cst_128 {dimension_numbers = #tpu.dot_dimension_numbers<[1], [0], [0], [1], [0, 0, 1, 1], [], []>} : vector<8x8xf32>, vector<8x8xf32>, vector<8x8xf32> -> vector<8x8xf32>
    %339 = tpu.reciprocal %337 {approx = true} : vector<8x1xf32> -> vector<8x1xf32>
    %340 = vector.broadcast %339 : vector<8x1xf32> to vector<8x8xf32>
    %341 = arith.mulf %338, %340 : vector<8x8xf32>
    %342 = vector.extract_strided_slice %287 {offsets = [0, 24], sizes = [8, 8], strides = [1, 1]} : vector<8x96xf32> to vector<8x8xf32>
    %343 = vector.extract_strided_slice %287 {offsets = [0, 56], sizes = [8, 8], strides = [1, 1]} : vector<8x96xf32> to vector<8x8xf32>
    %344 = vector.extract_strided_slice %287 {offsets = [0, 88], sizes = [8, 8], strides = [1, 1]} : vector<8x96xf32> to vector<8x8xf32>
    "tpu.trace_start"() <{level = 10 : i32, message = "qd,kd->qk"}> : () -> ()
    %cst_129 = arith.constant dense<0.000000e+00> : vector<8x8xf32>
    %345 = tpu.matmul %342, %343, %cst_129 {dimension_numbers = #tpu.dot_dimension_numbers<[1], [1], [0], [0], [0, 0, 1, 0], [], []>} : vector<8x8xf32>, vector<8x8xf32>, vector<8x8xf32> -> vector<8x8xf32>
    "tpu.trace_stop"() : () -> ()
    %cst_130 = arith.constant 0.353553385 : f32
    %346 = vector.broadcast %cst_130 : f32 to vector<8x8xf32>
    %347 = arith.mulf %345, %346 : vector<8x8xf32>
    %348 = arith.addf %347, %30 : vector<8x8xf32>
    %cst_131 = arith.constant dense<0xFF800000> : vector<8xf32>
    %349 = vector.multi_reduction <maximumf>, %348, %cst_131 [1] : vector<8x8xf32> to vector<8xf32>
    %350 = vector.shape_cast %349 : vector<8xf32> to vector<8x1xf32>
    %351 = vector.broadcast %350 : vector<8x1xf32> to vector<8x8xf32>
    %352 = arith.subf %348, %351 : vector<8x8xf32>
    %353 = math.exp %352 : vector<8x8xf32>
    %cst_132 = arith.constant dense<0.000000e+00> : vector<8xf32>
    %354 = vector.multi_reduction <add>, %353, %cst_132 [1] : vector<8x8xf32> to vector<8xf32>
    %355 = vector.shape_cast %354 : vector<8xf32> to vector<8x1xf32>
    %cst_133 = arith.constant dense<0.000000e+00> : vector<8x8xf32>
    %356 = tpu.matmul %353, %344, %cst_133 {dimension_numbers = #tpu.dot_dimension_numbers<[1], [0], [0], [1], [0, 0, 1, 1], [], []>} : vector<8x8xf32>, vector<8x8xf32>, vector<8x8xf32> -> vector<8x8xf32>
    %357 = tpu.reciprocal %355 {approx = true} : vector<8x1xf32> -> vector<8x1xf32>
    %358 = vector.broadcast %357 : vector<8x1xf32> to vector<8x8xf32>
    %359 = arith.mulf %356, %358 : vector<8x8xf32>
    %360 = tpu.concatenate %305, %323, %341, %359 in 1 : vector<8x8xf32>, vector<8x8xf32>, vector<8x8xf32>, vector<8x8xf32> -> vector<8x32xf32>
    %361 = vector.extract_strided_slice %286 {offsets = [8, 0], sizes = [8, 96], strides = [1, 1]} : vector<16x96xf32> to vector<8x96xf32>
    %362 = vector.extract_strided_slice %361 {offsets = [0, 0], sizes = [8, 8], strides = [1, 1]} : vector<8x96xf32> to vector<8x8xf32>
    %363 = vector.extract_strided_slice %361 {offsets = [0, 32], sizes = [8, 8], strides = [1, 1]} : vector<8x96xf32> to vector<8x8xf32>
    %364 = vector.extract_strided_slice %361 {offsets = [0, 64], sizes = [8, 8], strides = [1, 1]} : vector<8x96xf32> to vector<8x8xf32>
    "tpu.trace_start"() <{level = 10 : i32, message = "qd,kd->qk"}> : () -> ()
    %cst_134 = arith.constant dense<0.000000e+00> : vector<8x8xf32>
    %365 = tpu.matmul %362, %363, %cst_134 {dimension_numbers = #tpu.dot_dimension_numbers<[1], [1], [0], [0], [0, 0, 1, 0], [], []>} : vector<8x8xf32>, vector<8x8xf32>, vector<8x8xf32> -> vector<8x8xf32>
    "tpu.trace_stop"() : () -> ()
    %cst_135 = arith.constant 0.353553385 : f32
    %366 = vector.broadcast %cst_135 : f32 to vector<8x8xf32>
    %367 = arith.mulf %365, %366 : vector<8x8xf32>
    %368 = arith.addf %367, %35 : vector<8x8xf32>
    %cst_136 = arith.constant dense<0xFF800000> : vector<8xf32>
    %369 = vector.multi_reduction <maximumf>, %368, %cst_136 [1] : vector<8x8xf32> to vector<8xf32>
    %370 = vector.shape_cast %369 : vector<8xf32> to vector<8x1xf32>
    %371 = vector.broadcast %370 : vector<8x1xf32> to vector<8x8xf32>
    %372 = arith.subf %368, %371 : vector<8x8xf32>
    %373 = math.exp %372 : vector<8x8xf32>
    %cst_137 = arith.constant dense<0.000000e+00> : vector<8xf32>
    %374 = vector.multi_reduction <add>, %373, %cst_137 [1] : vector<8x8xf32> to vector<8xf32>
    %375 = vector.shape_cast %374 : vector<8xf32> to vector<8x1xf32>
    %cst_138 = arith.constant dense<0.000000e+00> : vector<8x8xf32>
    %376 = tpu.matmul %373, %364, %cst_138 {dimension_numbers = #tpu.dot_dimension_numbers<[1], [0], [0], [1], [0, 0, 1, 1], [], []>} : vector<8x8xf32>, vector<8x8xf32>, vector<8x8xf32> -> vector<8x8xf32>
    %377 = tpu.reciprocal %375 {approx = true} : vector<8x1xf32> -> vector<8x1xf32>
    %378 = vector.broadcast %377 : vector<8x1xf32> to vector<8x8xf32>
    %379 = arith.mulf %376, %378 : vector<8x8xf32>
    %380 = vector.extract_strided_slice %361 {offsets = [0, 8], sizes = [8, 8], strides = [1, 1]} : vector<8x96xf32> to vector<8x8xf32>
    %381 = vector.extract_strided_slice %361 {offsets = [0, 40], sizes = [8, 8], strides = [1, 1]} : vector<8x96xf32> to vector<8x8xf32>
    %382 = vector.extract_strided_slice %361 {offsets = [0, 72], sizes = [8, 8], strides = [1, 1]} : vector<8x96xf32> to vector<8x8xf32>
    "tpu.trace_start"() <{level = 10 : i32, message = "qd,kd->qk"}> : () -> ()
    %cst_139 = arith.constant dense<0.000000e+00> : vector<8x8xf32>
    %383 = tpu.matmul %380, %381, %cst_139 {dimension_numbers = #tpu.dot_dimension_numbers<[1], [1], [0], [0], [0, 0, 1, 0], [], []>} : vector<8x8xf32>, vector<8x8xf32>, vector<8x8xf32> -> vector<8x8xf32>
    "tpu.trace_stop"() : () -> ()
    %cst_140 = arith.constant 0.353553385 : f32
    %384 = vector.broadcast %cst_140 : f32 to vector<8x8xf32>
    %385 = arith.mulf %383, %384 : vector<8x8xf32>
    %386 = arith.addf %385, %35 : vector<8x8xf32>
    %cst_141 = arith.constant dense<0xFF800000> : vector<8xf32>
    %387 = vector.multi_reduction <maximumf>, %386, %cst_141 [1] : vector<8x8xf32> to vector<8xf32>
    %388 = vector.shape_cast %387 : vector<8xf32> to vector<8x1xf32>
    %389 = vector.broadcast %388 : vector<8x1xf32> to vector<8x8xf32>
    %390 = arith.subf %386, %389 : vector<8x8xf32>
    %391 = math.exp %390 : vector<8x8xf32>
    %cst_142 = arith.constant dense<0.000000e+00> : vector<8xf32>
    %392 = vector.multi_reduction <add>, %391, %cst_142 [1] : vector<8x8xf32> to vector<8xf32>
    %393 = vector.shape_cast %392 : vector<8xf32> to vector<8x1xf32>
    %cst_143 = arith.constant dense<0.000000e+00> : vector<8x8xf32>
    %394 = tpu.matmul %391, %382, %cst_143 {dimension_numbers = #tpu.dot_dimension_numbers<[1], [0], [0], [1], [0, 0, 1, 1], [], []>} : vector<8x8xf32>, vector<8x8xf32>, vector<8x8xf32> -> vector<8x8xf32>
    %395 = tpu.reciprocal %393 {approx = true} : vector<8x1xf32> -> vector<8x1xf32>
    %396 = vector.broadcast %395 : vector<8x1xf32> to vector<8x8xf32>
    %397 = arith.mulf %394, %396 : vector<8x8xf32>
    %398 = vector.extract_strided_slice %361 {offsets = [0, 16], sizes = [8, 8], strides = [1, 1]} : vector<8x96xf32> to vector<8x8xf32>
    %399 = vector.extract_strided_slice %361 {offsets = [0, 48], sizes = [8, 8], strides = [1, 1]} : vector<8x96xf32> to vector<8x8xf32>
    %400 = vector.extract_strided_slice %361 {offsets = [0, 80], sizes = [8, 8], strides = [1, 1]} : vector<8x96xf32> to vector<8x8xf32>
    "tpu.trace_start"() <{level = 10 : i32, message = "qd,kd->qk"}> : () -> ()
    %cst_144 = arith.constant dense<0.000000e+00> : vector<8x8xf32>
    %401 = tpu.matmul %398, %399, %cst_144 {dimension_numbers = #tpu.dot_dimension_numbers<[1], [1], [0], [0], [0, 0, 1, 0], [], []>} : vector<8x8xf32>, vector<8x8xf32>, vector<8x8xf32> -> vector<8x8xf32>
    "tpu.trace_stop"() : () -> ()
    %cst_145 = arith.constant 0.353553385 : f32
    %402 = vector.broadcast %cst_145 : f32 to vector<8x8xf32>
    %403 = arith.mulf %401, %402 : vector<8x8xf32>
    %404 = arith.addf %403, %35 : vector<8x8xf32>
    %cst_146 = arith.constant dense<0xFF800000> : vector<8xf32>
    %405 = vector.multi_reduction <maximumf>, %404, %cst_146 [1] : vector<8x8xf32> to vector<8xf32>
    %406 = vector.shape_cast %405 : vector<8xf32> to vector<8x1xf32>
    %407 = vector.broadcast %406 : vector<8x1xf32> to vector<8x8xf32>
    %408 = arith.subf %404, %407 : vector<8x8xf32>
    %409 = math.exp %408 : vector<8x8xf32>
    %cst_147 = arith.constant dense<0.000000e+00> : vector<8xf32>
    %410 = vector.multi_reduction <add>, %409, %cst_147 [1] : vector<8x8xf32> to vector<8xf32>
    %411 = vector.shape_cast %410 : vector<8xf32> to vector<8x1xf32>
    %cst_148 = arith.constant dense<0.000000e+00> : vector<8x8xf32>
    %412 = tpu.matmul %409, %400, %cst_148 {dimension_numbers = #tpu.dot_dimension_numbers<[1], [0], [0], [1], [0, 0, 1, 1], [], []>} : vector<8x8xf32>, vector<8x8xf32>, vector<8x8xf32> -> vector<8x8xf32>
    %413 = tpu.reciprocal %411 {approx = true} : vector<8x1xf32> -> vector<8x1xf32>
    %414 = vector.broadcast %413 : vector<8x1xf32> to vector<8x8xf32>
    %415 = arith.mulf %412, %414 : vector<8x8xf32>
    %416 = vector.extract_strided_slice %361 {offsets = [0, 24], sizes = [8, 8], strides = [1, 1]} : vector<8x96xf32> to vector<8x8xf32>
    %417 = vector.extract_strided_slice %361 {offsets = [0, 56], sizes = [8, 8], strides = [1, 1]} : vector<8x96xf32> to vector<8x8xf32>
    %418 = vector.extract_strided_slice %361 {offsets = [0, 88], sizes = [8, 8], strides = [1, 1]} : vector<8x96xf32> to vector<8x8xf32>
    "tpu.trace_start"() <{level = 10 : i32, message = "qd,kd->qk"}> : () -> ()
    %cst_149 = arith.constant dense<0.000000e+00> : vector<8x8xf32>
    %419 = tpu.matmul %416, %417, %cst_149 {dimension_numbers = #tpu.dot_dimension_numbers<[1], [1], [0], [0], [0, 0, 1, 0], [], []>} : vector<8x8xf32>, vector<8x8xf32>, vector<8x8xf32> -> vector<8x8xf32>
    "tpu.trace_stop"() : () -> ()
    %cst_150 = arith.constant 0.353553385 : f32
    %420 = vector.broadcast %cst_150 : f32 to vector<8x8xf32>
    %421 = arith.mulf %419, %420 : vector<8x8xf32>
    %422 = arith.addf %421, %35 : vector<8x8xf32>
    %cst_151 = arith.constant dense<0xFF800000> : vector<8xf32>
    %423 = vector.multi_reduction <maximumf>, %422, %cst_151 [1] : vector<8x8xf32> to vector<8xf32>
    %424 = vector.shape_cast %423 : vector<8xf32> to vector<8x1xf32>
    %425 = vector.broadcast %424 : vector<8x1xf32> to vector<8x8xf32>
    %426 = arith.subf %422, %425 : vector<8x8xf32>
    %427 = math.exp %426 : vector<8x8xf32>
    %cst_152 = arith.constant dense<0.000000e+00> : vector<8xf32>
    %428 = vector.multi_reduction <add>, %427, %cst_152 [1] : vector<8x8xf32> to vector<8xf32>
    %429 = vector.shape_cast %428 : vector<8xf32> to vector<8x1xf32>
    %cst_153 = arith.constant dense<0.000000e+00> : vector<8x8xf32>
    %430 = tpu.matmul %427, %418, %cst_153 {dimension_numbers = #tpu.dot_dimension_numbers<[1], [0], [0], [1], [0, 0, 1, 1], [], []>} : vector<8x8xf32>, vector<8x8xf32>, vector<8x8xf32> -> vector<8x8xf32>
    %431 = tpu.reciprocal %429 {approx = true} : vector<8x1xf32> -> vector<8x1xf32>
    %432 = vector.broadcast %431 : vector<8x1xf32> to vector<8x8xf32>
    %433 = arith.mulf %430, %432 : vector<8x8xf32>
    %434 = tpu.concatenate %379, %397, %415, %433 in 1 : vector<8x8xf32>, vector<8x8xf32>, vector<8x8xf32>, vector<8x8xf32> -> vector<8x32xf32>
    %435 = tpu.concatenate %360, %434 in 0 : vector<8x32xf32>, vector<8x32xf32> -> vector<16x32xf32>
    %c1_154 = arith.constant 1 : index
    %c0_155 = arith.constant 0 : index
    %c0_156 = arith.constant 0 : index
    %436 = vector.load %arg6[%c1_154, %c0_155, %c0_156] : memref<2x32x32xf32, #tpu.memory_space<vmem>>, vector<1x32x32xf32>
    %437 = vector.shape_cast %436 : vector<1x32x32xf32> to vector<32x32xf32>
    %cst_157 = arith.constant dense<0.000000e+00> : vector<16x32xf32>
    %438 = tpu.matmul %435, %437, %cst_157 {dimension_numbers = #tpu.dot_dimension_numbers<[1], [0], [0], [1], [0, 0, 1, 1], [], []>} : vector<16x32xf32>, vector<32x32xf32>, vector<16x32xf32> -> vector<16x32xf32>
    %c1_158 = arith.constant 1 : index
    %c0_159 = arith.constant 0 : index
    %c0_160 = arith.constant 0 : index
    %439 = vector.load %arg7[%c1_158, %c0_159, %c0_160] : memref<2x1x32xf32, #tpu.memory_space<vmem>>, vector<1x1x32xf32>
    %440 = vector.shape_cast %439 : vector<1x1x32xf32> to vector<1x32xf32>
    %441 = vector.broadcast %440 : vector<1x32xf32> to vector<16x32xf32>
    %442 = arith.addf %438, %441 : vector<16x32xf32>
    %443 = arith.addf %442, %279 : vector<16x32xf32>
    %c1_161 = arith.constant 1 : index
    %c0_162 = arith.constant 0 : index
    %c0_163 = arith.constant 0 : index
    %444 = vector.load %arg8[%c1_161, %c0_162, %c0_163] : memref<2x1x32xf32, #tpu.memory_space<vmem>>, vector<1x1x32xf32>
    %445 = vector.shape_cast %444 : vector<1x1x32xf32> to vector<1x32xf32>
    %c1_164 = arith.constant 1 : index
    %c0_165 = arith.constant 0 : index
    %c0_166 = arith.constant 0 : index
    %446 = vector.load %arg9[%c1_164, %c0_165, %c0_166] : memref<2x1x32xf32, #tpu.memory_space<vmem>>, vector<1x1x32xf32>
    %447 = vector.shape_cast %446 : vector<1x1x32xf32> to vector<1x32xf32>
    %cst_167 = arith.constant dense<0.000000e+00> : vector<16xf32>
    %448 = vector.multi_reduction <add>, %443, %cst_167 [1] : vector<16x32xf32> to vector<16xf32>
    %449 = vector.shape_cast %448 : vector<16xf32> to vector<16x1xf32>
    %cst_168 = arith.constant 3.200000e+01 : f32
    %450 = vector.broadcast %cst_168 : f32 to vector<16x1xf32>
    %451 = arith.divf %449, %450 : vector<16x1xf32>
    %452 = vector.broadcast %451 : vector<16x1xf32> to vector<16x32xf32>
    %453 = arith.subf %443, %452 : vector<16x32xf32>
    %454 = arith.mulf %453, %453 : vector<16x32xf32>
    %cst_169 = arith.constant dense<0.000000e+00> : vector<16xf32>
    %455 = vector.multi_reduction <add>, %454, %cst_169 [1] : vector<16x32xf32> to vector<16xf32>
    %456 = vector.shape_cast %455 : vector<16xf32> to vector<16x1xf32>
    %cst_170 = arith.constant 3.200000e+01 : f32
    %457 = vector.broadcast %cst_170 : f32 to vector<16x1xf32>
    %458 = arith.divf %456, %457 : vector<16x1xf32>
    %459 = vector.broadcast %451 : vector<16x1xf32> to vector<16x32xf32>
    %460 = arith.subf %443, %459 : vector<16x32xf32>
    %cst_171 = arith.constant 9.99999974E-6 : f32
    %461 = vector.broadcast %cst_171 : f32 to vector<16x1xf32>
    %462 = arith.addf %458, %461 : vector<16x1xf32>
    %463 = math.rsqrt %462 : vector<16x1xf32>
    %464 = vector.broadcast %463 : vector<16x1xf32> to vector<16x32xf32>
    %465 = arith.mulf %460, %464 : vector<16x32xf32>
    %466 = vector.broadcast %445 : vector<1x32xf32> to vector<16x32xf32>
    %467 = arith.mulf %465, %466 : vector<16x32xf32>
    %468 = vector.broadcast %447 : vector<1x32xf32> to vector<16x32xf32>
    %469 = arith.addf %467, %468 : vector<16x32xf32>
    %c1_172 = arith.constant 1 : index
    %c0_173 = arith.constant 0 : index
    %c0_174 = arith.constant 0 : index
    %470 = vector.load %arg10[%c1_172, %c0_173, %c0_174] : memref<2x32x64xf32, #tpu.memory_space<vmem>>, vector<1x32x64xf32>
    %471 = vector.shape_cast %470 : vector<1x32x64xf32> to vector<32x64xf32>
    %cst_175 = arith.constant dense<0.000000e+00> : vector<16x64xf32>
    %472 = tpu.matmul %469, %471, %cst_175 {dimension_numbers = #tpu.dot_dimension_numbers<[1], [0], [0], [1], [0, 0, 1, 1], [], []>} : vector<16x32xf32>, vector<32x64xf32>, vector<16x64xf32> -> vector<16x64xf32>
    %c1_176 = arith.constant 1 : index
    %c0_177 = arith.constant 0 : index
    %c0_178 = arith.constant 0 : index
    %473 = vector.load %arg11[%c1_176, %c0_177, %c0_178] : memref<2x1x64xf32, #tpu.memory_space<vmem>>, vector<1x1x64xf32>
    %474 = vector.shape_cast %473 : vector<1x1x64xf32> to vector<1x64xf32>
    %475 = vector.broadcast %474 : vector<1x64xf32> to vector<16x64xf32>
    %476 = arith.addf %472, %475 : vector<16x64xf32>
    %cst_179 = arith.constant 5.000000e-01 : f32
    %477 = vector.broadcast %cst_179 : f32 to vector<16x64xf32>
    %478 = arith.mulf %477, %476 : vector<16x64xf32>
    %cst_180 = arith.constant 4.471500e-02 : f32
    %479 = vector.broadcast %cst_180 : f32 to vector<16x64xf32>
    %480 = arith.mulf %479, %476 : vector<16x64xf32>
    %481 = arith.mulf %480, %476 : vector<16x64xf32>
    %482 = arith.mulf %481, %476 : vector<16x64xf32>
    %483 = arith.addf %476, %482 : vector<16x64xf32>
    %cst_181 = arith.constant 0.797884583 : f32
    %484 = vector.broadcast %cst_181 : f32 to vector<16x64xf32>
    %485 = arith.mulf %484, %483 : vector<16x64xf32>
    %486 = math.tanh %485 : vector<16x64xf32>
    %cst_182 = arith.constant 1.000000e+00 : f32
    %487 = vector.broadcast %cst_182 : f32 to vector<16x64xf32>
    %488 = arith.addf %487, %486 : vector<16x64xf32>
    %489 = arith.mulf %478, %488 : vector<16x64xf32>
    %c1_183 = arith.constant 1 : index
    %c0_184 = arith.constant 0 : index
    %c0_185 = arith.constant 0 : index
    %490 = vector.load %arg12[%c1_183, %c0_184, %c0_185] : memref<2x64x32xf32, #tpu.memory_space<vmem>>, vector<1x64x32xf32>
    %491 = vector.shape_cast %490 : vector<1x64x32xf32> to vector<64x32xf32>
    %cst_186 = arith.constant dense<0.000000e+00> : vector<16x32xf32>
    %492 = tpu.matmul %489, %491, %cst_186 {dimension_numbers = #tpu.dot_dimension_numbers<[1], [0], [0], [1], [0, 0, 1, 1], [], []>} : vector<16x64xf32>, vector<64x32xf32>, vector<16x32xf32> -> vector<16x32xf32>
    %c1_187 = arith.constant 1 : index
    %c0_188 = arith.constant 0 : index
    %c0_189 = arith.constant 0 : index
    %493 = vector.load %arg13[%c1_187, %c0_188, %c0_189] : memref<2x1x32xf32, #tpu.memory_space<vmem>>, vector<1x1x32xf32>
    %494 = vector.shape_cast %493 : vector<1x1x32xf32> to vector<1x32xf32>
    %495 = vector.broadcast %494 : vector<1x32xf32> to vector<16x32xf32>
    %496 = arith.addf %492, %495 : vector<16x32xf32>
    %497 = arith.addf %496, %469 : vector<16x32xf32>
    %c1_190 = arith.constant 1 : index
    %c0_191 = arith.constant 0 : index
    %c0_192 = arith.constant 0 : index
    %498 = vector.load %arg14[%c1_190, %c0_191, %c0_192] : memref<2x1x32xf32, #tpu.memory_space<vmem>>, vector<1x1x32xf32>
    %499 = vector.shape_cast %498 : vector<1x1x32xf32> to vector<1x32xf32>
    %c1_193 = arith.constant 1 : index
    %c0_194 = arith.constant 0 : index
    %c0_195 = arith.constant 0 : index
    %500 = vector.load %arg15[%c1_193, %c0_194, %c0_195] : memref<2x1x32xf32, #tpu.memory_space<vmem>>, vector<1x1x32xf32>
    %501 = vector.shape_cast %500 : vector<1x1x32xf32> to vector<1x32xf32>
    %cst_196 = arith.constant dense<0.000000e+00> : vector<16xf32>
    %502 = vector.multi_reduction <add>, %497, %cst_196 [1] : vector<16x32xf32> to vector<16xf32>
    %503 = vector.shape_cast %502 : vector<16xf32> to vector<16x1xf32>
    %cst_197 = arith.constant 3.200000e+01 : f32
    %504 = vector.broadcast %cst_197 : f32 to vector<16x1xf32>
    %505 = arith.divf %503, %504 : vector<16x1xf32>
    %506 = vector.broadcast %505 : vector<16x1xf32> to vector<16x32xf32>
    %507 = arith.subf %497, %506 : vector<16x32xf32>
    %508 = arith.mulf %507, %507 : vector<16x32xf32>
    %cst_198 = arith.constant dense<0.000000e+00> : vector<16xf32>
    %509 = vector.multi_reduction <add>, %508, %cst_198 [1] : vector<16x32xf32> to vector<16xf32>
    %510 = vector.shape_cast %509 : vector<16xf32> to vector<16x1xf32>
    %cst_199 = arith.constant 3.200000e+01 : f32
    %511 = vector.broadcast %cst_199 : f32 to vector<16x1xf32>
    %512 = arith.divf %510, %511 : vector<16x1xf32>
    %513 = vector.broadcast %505 : vector<16x1xf32> to vector<16x32xf32>
    %514 = arith.subf %497, %513 : vector<16x32xf32>
    %cst_200 = arith.constant 9.99999974E-6 : f32
    %515 = vector.broadcast %cst_200 : f32 to vector<16x1xf32>
    %516 = arith.addf %512, %515 : vector<16x1xf32>
    %517 = math.rsqrt %516 : vector<16x1xf32>
    %518 = vector.broadcast %517 : vector<16x1xf32> to vector<16x32xf32>
    %519 = arith.mulf %514, %518 : vector<16x32xf32>
    %520 = vector.broadcast %499 : vector<1x32xf32> to vector<16x32xf32>
    %521 = arith.mulf %519, %520 : vector<16x32xf32>
    %522 = vector.broadcast %501 : vector<1x32xf32> to vector<16x32xf32>
    %523 = arith.addf %521, %522 : vector<16x32xf32>
    %524 = vector.extract_strided_slice %523 {offsets = [0, 0], sizes = [1, 32], strides = [1, 1]} : vector<16x32xf32> to vector<1x32xf32>
    %525 = vector.extract_strided_slice %523 {offsets = [8, 0], sizes = [1, 32], strides = [1, 1]} : vector<16x32xf32> to vector<1x32xf32>
    %526 = tpu.concatenate %524, %525 in 0 : vector<1x32xf32>, vector<1x32xf32> -> vector<2x32xf32>
    %c0_201 = arith.constant 0 : index
    %c0_202 = arith.constant 0 : index
    %527 = vector.load %arg16[%c0_201, %c0_202] : memref<2x32xf32, #tpu.memory_space<vmem>>, vector<2x32xf32>
    tpu.vector_store %arg16[%c0_201, %c0_202], %526 {strides = array<i32>} : memref<2x32xf32, #tpu.memory_space<vmem>>, vector<2x32xf32>,
    return
  }
}

</mosaic_0001>

<llo_original>
// kernel: tpu_custom_call.1
$region0: #{tpu_custom_call.1}
  #allocation0 [shape = 'u32[]', space=smem, size = 0x4, offset = 0x4, fixed_abs, tag = 'smem constant byte address 0x4 - core index']
  #allocation1 [shape = 'u32[72,128]{1,0:T(1,128)}', space=vmem, size = 0x9000, scoped, tag = 'internal scratch']
  %s0 = inlined_call_operand.hbm [shape: f32[2,8,32], index: 0, kind: input, shape index: {}]
  %s1 = inlined_call_operand.hbm [shape: f32[2,8], index: 1, kind: input, shape index: {}]
  %s2 = inlined_call_operand.hbm [shape: f32[1,32], index: 2, kind: input, shape index: {}]
  %s3 = inlined_call_operand.hbm [shape: f32[1,32], index: 3, kind: input, shape index: {}]
  %s4 = inlined_call_operand.vmem [shape: f32[2,32,96], index: 4, kind: input, shape index: {}]
  %s5 = inlined_call_operand.vmem [shape: f32[2,1,96], index: 5, kind: input, shape index: {}]
  %s6 = inlined_call_operand.vmem [shape: f32[2,32,32], index: 6, kind: input, shape index: {}]
  %s7 = inlined_call_operand.vmem [shape: f32[2,1,32], index: 7, kind: input, shape index: {}]
  %s8 = inlined_call_operand.hbm [shape: f32[2,1,32], index: 8, kind: input, shape index: {}]
  %s9 = inlined_call_operand.vmem [shape: f32[2,1,32], index: 9, kind: input, shape index: {}]
  %s10 = inlined_call_operand.vmem [shape: f32[2,32,64], index: 10, kind: input, shape index: {}]
  %s11 = inlined_call_operand.vmem [shape: f32[2,1,64], index: 11, kind: input, shape index: {}]
  %s12 = inlined_call_operand.vmem [shape: f32[2,64,32], index: 12, kind: input, shape index: {}]
  %s13 = inlined_call_operand.vmem [shape: f32[2,1,32], index: 13, kind: input, shape index: {}]
  %s14 = inlined_call_operand.hbm [shape: f32[2,1,32], index: 14, kind: input, shape index: {}]
  %s15 = inlined_call_operand.vmem [shape: f32[2,1,32], index: 15, kind: input, shape index: {}]
  %s16 = inlined_call_operand.hbm [shape: f32[2,32], index: 16, kind: output, shape index: {}]
  %s17 = sld [smem:[#allocation0]]
  $region98: #{tpu_custom_call.1} parent=0
    _
  %s19 = ssub.s32 1, %s17
  %s20 = scalar_select 0, %s19, %s17
  $region1: #{tpu_custom_call.1} parent=0
    #allocation2 [shape = 'u8[8192]{0}', space=vmem, size = 0x2000, scoped, tag = 'input window, operand 0, single buffered']
    #allocation3 [shape = 's32[1]{0}', space=sflag, size = 0x4, scoped, tag = 'scoped memory for tpu_custom_call.1']
    #allocation4 [shape = 's32[1]{0}', space=sflag, size = 0x4, scoped, tag = 'scoped memory for tpu_custom_call.1']
    #allocation5 [shape = 'u8[1024]{0}', space=vmem, size = 0x400, scoped, tag = 'input window, operand 1, single buffered']
    #allocation6 [shape = 's32[1]{0}', space=sflag, size = 0x4, scoped, tag = 'scoped memory for tpu_custom_call.1']
    #allocation7 [shape = 'u8[512]{0}', space=vmem, size = 0x400, scoped, tag = 'input window, operand 2, single buffered']
    #allocation8 [shape = 'u8[512]{0}', space=vmem, size = 0x400, scoped, tag = 'input window, operand 3, single buffered']
    #allocation9 [shape = 's32[1]{0}', space=sflag, size = 0x4, scoped, tag = 'scoped memory for tpu_custom_call.1']
    #allocation10 [shape = 'u8[1024]{0}', space=vmem, size = 0x400, scoped, tag = 'input window, operand 8, single buffered']
    #allocation11 [shape = 'u8[1024]{0}', space=vmem, size = 0x400, scoped, tag = 'input window, operand 14, single buffered']
    #allocation12 [shape = 's32[1]{0}', space=sflag, size = 0x4, scoped, tag = 'scoped memory for tpu_custom_call.1']
    #allocation13 [shape = 'u8[1024]{0}', space=vmem, size = 0x400, scoped, tag = 'output window, operand 0, single buffered']
    %21 = vsyncpa [#allocation3], 0
    %22 = vsyncpa [#allocation6], 0
    %23 = vsyncpa [#allocation9], 0
    %24 = vsyncpa [#allocation12], 0
    %25 = vsyncpa [#allocation4], 0
    // Predicated region
    $region2: #{tpu_custom_call.1} parent=1 // pred_check
      _
    $region3: #{tpu_custom_call.1} parent=1 // pred_check_branch
      %27 = sbr.rel (0) target = $region5
    $region4: #{tpu_custom_call.1} parent=1 // pred_region
      %29 = vsyncadd [#allocation3], 0
      %s30 = sshll.u32 %s0, 4
      %s31 = int_to_ptr.hbm [resolvable:$true] %s30
      %s32 = sshll.u32 [#allocation2], 4
      %s33 = int_to_ptr.vmem [resolvable:$true] %s32
      %38 = dma.hbm_to_vmem [thread:$0]  %s31, 256, %s33, [#allocation3], 128, 128, 8
    $region5: #{tpu_custom_call.1} parent=1 // pred_fallthru
      _
    // Predicated region
    $region6: #{tpu_custom_call.1} parent=1 // pred_check
      _
    $region7: #{tpu_custom_call.1} parent=1 // pred_check_branch
      %40 = sbr.rel (0) target = $region9
    $region8: #{tpu_custom_call.1} parent=1 // pred_region
      %42 = vsyncadd [#allocation6], 0
      %s44 = sshll.u32 %s1, 4
      %s45 = int_to_ptr.hbm [resolvable:$true] %s44
      %s46 = sshll.u32 [#allocation5], 4
      %s47 = int_to_ptr.vmem [resolvable:$true] %s46
      %49 = dma.hbm_to_vmem [thread:$0]  %s45, 32, %s47, [#allocation6]
    $region9: #{tpu_custom_call.1} parent=1 // pred_fallthru
      _
    // Predicated region
    $region10: #{tpu_custom_call.1} parent=1 // pred_check
      _
    $region11: #{tpu_custom_call.1} parent=1 // pred_check_branch
      %51 = sbr.rel (0) target = $region13
    $region12: #{tpu_custom_call.1} parent=1 // pred_region
      %53 = vsyncadd [#allocation6], 0
      %s55 = sshll.u32 %s2, 4
      %s56 = int_to_ptr.hbm [resolvable:$true] %s55
      %s57 = sshll.u32 [#allocation7], 4
      %s58 = int_to_ptr.vmem [resolvable:$true] %s57
      %60 = dma.hbm_to_vmem [thread:$0]  %s56, 16, %s58, [#allocation6]
    $region13: #{tpu_custom_call.1} parent=1 // pred_fallthru
      _
    // Predicated region
    $region14: #{tpu_custom_call.1} parent=1 // pred_check
      _
    $region15: #{tpu_custom_call.1} parent=1 // pred_check_branch
      %62 = sbr.rel (0) target = $region17
    $region16: #{tpu_custom_call.1} parent=1 // pred_region
      %64 = vsyncadd [#allocation9], 0
      %s66 = sshll.u32 %s3, 4
      %s67 = int_to_ptr.hbm [resolvable:$true] %s66
      %s68 = sshll.u32 [#allocation8], 4
      %s69 = int_to_ptr.vmem [resolvable:$true] %s68
      %71 = dma.hbm_to_vmem [thread:$0]  %s67, 16, %s69, [#allocation9]
    $region17: #{tpu_custom_call.1} parent=1 // pred_fallthru
      _
    // Predicated region
    $region18: #{tpu_custom_call.1} parent=1 // pred_check
      _
    $region19: #{tpu_custom_call.1} parent=1 // pred_check_branch
      %73 = sbr.rel (0) target = $region21
    $region20: #{tpu_custom_call.1} parent=1 // pred_region
      _
    $region21: #{tpu_custom_call.1} parent=1 // pred_fallthru
      _
    // Predicated region
    $region22: #{tpu_custom_call.1} parent=1 // pred_check
      _
    $region23: #{tpu_custom_call.1} parent=1 // pred_check_branch
      %75 = sbr.rel (0) target = $region25
    $region24: #{tpu_custom_call.1} parent=1 // pred_region
      _
    $region25: #{tpu_custom_call.1} parent=1 // pred_fallthru
      _
    // Predicated region
    $region26: #{tpu_custom_call.1} parent=1 // pred_check
      _
    $region27: #{tpu_custom_call.1} parent=1 // pred_check_branch
      %77 = sbr.rel (0) target = $region29
    $region28: #{tpu_custom_call.1} parent=1 // pred_region
      _
    $region29: #{tpu_custom_call.1} parent=1 // pred_fallthru
      _
    // Predicated region
    $region30: #{tpu_custom_call.1} parent=1 // pred_check
      _
    $region31: #{tpu_custom_call.1} parent=1 // pred_check_branch
      %79 = sbr.rel (0) target = $region33
    $region32: #{tpu_custom_call.1} parent=1 // pred_region
      _
    $region33: #{tpu_custom_call.1} parent=1 // pred_fallthru
      _
    // Predicated region
    $region34: #{tpu_custom_call.1} parent=1 // pred_check
      _
    $region35: #{tpu_custom_call.1} parent=1 // pred_check_branch
      %81 = sbr.rel (0) target = $region37
    $region36: #{tpu_custom_call.1} parent=1 // pred_region
      %83 = vsyncadd [#allocation9], 0
      %s84 = sshll.u32 %s8, 4
      %s85 = int_to_ptr.hbm [resolvable:$true] %s84
      %s86 = sshll.u32 [#allocation10], 4
      %s87 = int_to_ptr.vmem [resolvable:$true] %s86
      %92 = dma.hbm_to_vmem [thread:$0]  %s85, 32, %s87, [#allocation9], 16, 16, 1
    $region37: #{tpu_custom_call.1} parent=1 // pred_fallthru
      _
    // Predicated region
    $region38: #{tpu_custom_call.1} parent=1 // pred_check
      _
    $region39: #{tpu_custom_call.1} parent=1 // pred_check_branch
      %94 = sbr.rel (0) target = $region41
    $region40: #{tpu_custom_call.1} parent=1 // pred_region
      _
    $region41: #{tpu_custom_call.1} parent=1 // pred_fallthru
      _
    // Predicated region
    $region42: #{tpu_custom_call.1} parent=1 // pred_check
      _
    $region43: #{tpu_custom_call.1} parent=1 // pred_check_branch
      %96 = sbr.rel (0) target = $region45
    $region44: #{tpu_custom_call.1} parent=1 // pred_region
      _
    $region45: #{tpu_custom_call.1} parent=1 // pred_fallthru
      _
    // Predicated region
    $region46: #{tpu_custom_call.1} parent=1 // pred_check
      _
    $region47: #{tpu_custom_call.1} parent=1 // pred_check_branch
      %98 = sbr.rel (0) target = $region49
    $region48: #{tpu_custom_call.1} parent=1 // pred_region
      _
    $region49: #{tpu_custom_call.1} parent=1 // pred_fallthru
      _
    // Predicated region
    $region50: #{tpu_custom_call.1} parent=1 // pred_check
      _
    $region51: #{tpu_custom_call.1} parent=1 // pred_check_branch
      %100 = sbr.rel (0) target = $region53
    $region52: #{tpu_custom_call.1} parent=1 // pred_region
      _
    $region53: #{tpu_custom_call.1} parent=1 // pred_fallthru
      _
    // Predicated region
    $region54: #{tpu_custom_call.1} parent=1 // pred_check
      _
    $region55: #{tpu_custom_call.1} parent=1 // pred_check_branch
      %102 = sbr.rel (0) target = $region57
    $region56: #{tpu_custom_call.1} parent=1 // pred_region
      _
    $region57: #{tpu_custom_call.1} parent=1 // pred_fallthru
      _
    // Predicated region
    $region58: #{tpu_custom_call.1} parent=1 // pred_check
      _
    $region59: #{tpu_custom_call.1} parent=1 // pred_check_branch
      %104 = sbr.rel (0) target = $region61
    $region60: #{tpu_custom_call.1} parent=1 // pred_region
      %106 = vsyncadd [#allocation12], 0
      %s107 = sshll.u32 %s14, 4
      %s108 = int_to_ptr.hbm [resolvable:$true] %s107
      %s109 = sshll.u32 [#allocation11], 4
      %s110 = int_to_ptr.vmem [resolvable:$true] %s109
      %115 = dma.hbm_to_vmem [thread:$0]  %s108, 32, %s110, [#allocation12], 16, 16, 1
    $region61: #{tpu_custom_call.1} parent=1 // pred_fallthru
      _
    // Predicated region
    $region62: #{tpu_custom_call.1} parent=1 // pred_check
      _
    $region63: #{tpu_custom_call.1} parent=1 // pred_check_branch
      %117 = sbr.rel (0) target = $region65
    $region64: #{tpu_custom_call.1} parent=1 // pred_region
      _
    $region65: #{tpu_custom_call.1} parent=1 // pred_fallthru
      _
    // Predicated region
    $region66: #{tpu_custom_call.1} parent=1 // pred_check
      _
    $region67: #{tpu_custom_call.1} parent=1 // pred_check_branch
      %119 = sbr.rel (0) target = $region69
    $region68: #{tpu_custom_call.1} parent=1 // pred_region
      %121 = dma.done [#allocation3], 256
    $region69: #{tpu_custom_call.1} parent=1 // pred_fallthru
      _
    // Predicated region
    $region70: #{tpu_custom_call.1} parent=1 // pred_check
      _
    $region71: #{tpu_custom_call.1} parent=1 // pred_check_branch
      %123 = sbr.rel (0) target = $region73
    $region72: #{tpu_custom_call.1} parent=1 // pred_region
      %125 = dma.done [#allocation6], 32
    $region73: #{tpu_custom_call.1} parent=1 // pred_fallthru
      _
    // Predicated region
    $region74: #{tpu_custom_call.1} parent=1 // pred_check
      _
    $region75: #{tpu_custom_call.1} parent=1 // pred_check_branch
      %127 = sbr.rel (0) target = $region77
    $region76: #{tpu_custom_call.1} parent=1 // pred_region
      %129 = dma.done [#allocation6], 16
    $region77: #{tpu_custom_call.1} parent=1 // pred_fallthru
      _
    // Predicated region
    $region78: #{tpu_custom_call.1} parent=1 // pred_check
      _
    $region79: #{tpu_custom_call.1} parent=1 // pred_check_branch
      %131 = sbr.rel (0) target = $region81
    $region80: #{tpu_custom_call.1} parent=1 // pred_region
      %133 = dma.done [#allocation9], 16
    $region81: #{tpu_custom_call.1} parent=1 // pred_fallthru
      _
    // Predicated region
    $region82: #{tpu_custom_call.1} parent=1 // pred_check
      _
    $region83: #{tpu_custom_call.1} parent=1 // pred_check_branch
      %135 = sbr.rel (0) target = $region85
    $region84: #{tpu_custom_call.1} parent=1 // pred_region
      %137 = dma.done [#allocation9], 32
    $region85: #{tpu_custom_call.1} parent=1 // pred_fallthru
      _
    // Predicated region
    $region86: #{tpu_custom_call.1} parent=1 // pred_check
      _
    $region87: #{tpu_custom_call.1} parent=1 // pred_check_branch
      %139 = sbr.rel (0) target = $region89
    $region88: #{tpu_custom_call.1} parent=1 // pred_region
      %141 = dma.done [#allocation12], 32
    $region89: #{tpu_custom_call.1} parent=1 // pred_fallthru
      _
    %v142 = vld [vmem:[#allocation2] sm:$0xff]
    %v143 = vld [vmem:[#allocation2 + $0x8] sm:$0xff]
    %v144 = vld [vmem:[#allocation7] sm:$0x1]
    %v145 = vld [vmem:[#allocation8] sm:$0x1]
    %vm146 = vcmask 261120
    %v147 = vsel %vm146, %v142, 0.0
    %148 = vadd.xlane.f32.xlu0 %v147
    %v149 = vpop.xlane.xlu0 %148
    %v150 = vsel %vm146, %v143, 0.0
    %151 = vadd.xlane.f32.xlu0 %v150
    %v152 = vpop.xlane.xlu0 %151
    %v153 = vrcp.pop 32.0
    %v154 = vmul.f32 32.0, %v153
    %v155 = vsub.f32 1.0, %v154
    %v156 = vmul.f32 %v153, %v155
    %v157 = vadd.f32 %v153, %v156
    %vm158 = vweird.f32 %v153
    %v159 = vsel %vm158, %v153, %v157
    %v160 = vmul.f32 %v149, %v159
    %v161 = vmul.f32 %v152, %v159
    %v162 = vsub.f32 %v142, %v160
    %v163 = vsub.f32 %v143, %v161
    %v164 = vmul.f32 %v162, %v162
    %v165 = vmul.f32 %v163, %v163
    %v166 = vsel %vm146, %v164, 0.0
    %167 = vadd.xlane.f32.xlu0 %v166
    %v168 = vpop.xlane.xlu0 %167
    %v169 = vsel %vm146, %v165, 0.0
    %170 = vadd.xlane.f32.xlu0 %v169
    %v171 = vpop.xlane.xlu0 %170
    %v172 = vmul.f32 %v168, %v159
    %v173 = vmul.f32 %v171, %v159
    %v174 = vadd.f32 %v172, 1e-05
    %v175 = vadd.f32 %v173, 1e-05
    %v176 = vrsqrt.pop %v174
    %v177 = vmul.f32 %v176, %v174
    %v178 = vmul.f32 %v177, %v176
    %v179 = vmul.f32 0.5, %v178
    %v180 = vsub.f32 1.5, %v179
    %v181 = vmul.f32 %v176, %v180
    %vm182 = vweird.f32 %v174
    %vm183 = vweird.f32 %v176
    %vm184 = vmor %vm182, %vm183
    %v185 = vsel %vm184, %v176, %v181
    %v186 = vrsqrt.pop %v175
    %v187 = vmul.f32 %v186, %v175
    %v188 = vmul.f32 %v187, %v186
    %v189 = vmul.f32 0.5, %v188
    %v190 = vsub.f32 1.5, %v189
    %v191 = vmul.f32 %v186, %v190
    %vm192 = vweird.f32 %v175
    %vm193 = vweird.f32 %v186
    %vm194 = vmor %vm192, %vm193
    %v195 = vsel %vm194, %v186, %v191
    %v196 = vmul.f32 %v162, %v185
    %v197 = vmul.f32 %v163, %v195
    %v199 = vperm.slane %v144, 0
    %v201 = vmul.f32 %v196, %v199
    %v202 = vmul.f32 %v197, %v199
    %v204 = vperm.slane %v145, 0
    %v206 = vadd.f32 %v201, %v204
    %v207 = vadd.f32 %v202, %v204
    %v208 = vld [vmem:[#allocation5] sm:$0x1]
    %v209 = vperm.slane %v208, 0
    %v210 = vld [vmem:[#allocation5 + $0x1] sm:$0x1]
    %v211 = vperm.slane %v210, 0
    %v212 = vld [vmem:[%s4] sm:$0xff]
    %v213 = vld [vmem:[%s4 + $0x8] sm:$0xff]
    %v214 = vld [vmem:[%s4 + $0x10] sm:$0xff]
    %v215 = vld [vmem:[%s4 + $0x18] sm:$0xff]
    %v216 = vld [vmem:[%s5] sm:$0x1]
    %v218 = vperm.slane %v216, 0
    %v221 = vsel %vm146, %v206, 0
    %v224 = vsel %vm146, %v207, 0
    %226 = vmatpush.msra.mxu0 0.0
    %227 = vmatpush.msra.mxu0 0.0
    %228 = vmatpush.msra.mxu0 0.0
    %229 = vmatpush.msra.mxu0 0.0
    %230 = vmatpush.msra.mxu0 0.0
    %231 = vmatpush.msra.mxu0 0.0
    %232 = vmatpush.msra.mxu0 0.0
    %233 = vmatpush.msra.mxu0 0.0
    %234 = vmatpush.msra.mxu0 0.0
    %235 = vmatpush.msra.mxu0 0.0
    %236 = vmatpush.msra.mxu0 0.0
    %237 = vmatpush.msra.mxu0 0.0
    %238 = vmatpush.msra.mxu0 %v215
    %239 = vmatpush.msra.mxu0 %v214
    %240 = vmatpush.msra.mxu0 %v213
    %241 = vmatpush.msra.mxu0 %v212
    %242 = vmatmul.f32.gmra.mxu0 %v221
    %v243 = vpop.f32.mrf.mxu0
    %v244 = vadd.f32 %v218, %v243
    %245 = vmatmul.f32.gmra.mxu0 %v224
    %v246 = vpop.f32.mrf.mxu0
    %v247 = vadd.f32 %v218, %v246
    %248 = vdwg.mxu0
    %250 = vrot.lane.b32.xlu0 %v244, 96
    %v251 = vpop.permute.xlu0 %250
    %vm252 = vcmask 64512
    %v253 = vsel %vm252, %v244, 0
    %v255 = vsel %vm252, %v251, 0
    %257 = vmatpush.xpose.msra.mxu0 0.0
    %258 = vmatpush.xpose.msra.mxu0 0.0
    %259 = vmatpush.xpose.msra.mxu0 0.0
    %260 = vmatpush.xpose.msra.mxu0 0.0
    %261 = vmatpush.xpose.msra.mxu0 0.0
    %262 = vmatpush.xpose.msra.mxu0 0.0
    %263 = vmatpush.xpose.msra.mxu0 0.0
    %264 = vmatpush.xpose.msra.mxu0 0.0
    %265 = vmatpush.xpose.msra.mxu0 0.0
    %266 = vmatpush.xpose.msra.mxu0 0.0
    %267 = vmatpush.xpose.msra.mxu0 0.0
    %268 = vmatpush.xpose.msra.mxu0 0.0
    %269 = vmatpush.xpose.msra.mxu0 0.0
    %270 = vmatpush.xpose.msra.mxu0 0.0
    %271 = vmatpush.xpose.msra.mxu0 0.0
    %272 = vmatpush.xpose.msra.mxu0 %v255
    %273 = vmatmul.f32.gmra.mxu0 %v253
    %v274 = vpop.f32.mrf.mxu0
    %v275 = vadd.f32 0.0, %v274
    %276 = vdwg.mxu0
    %v277 = vmul.f32 %v275, 0.35355338
    %v278 = vadd.f32 %v277, %v209
    %v279 = vsel %vm252, %v278, -inf
    %280 = vmax.xlane.f32.xlu0 %v279
    %v281 = vpop.xlane.xlu0 %280
    %v282 = vsub.f32 %v278, %v281
    %v283 = vmul.f32 %v282, 1.442695
    %v284 = vpow.pop %v283
    %v285 = vsel %vm252, %v284, 0.0
    %286 = vadd.xlane.f32.xlu0 %v285
    %v287 = vpop.xlane.xlu0 %286
    %288 = vrot.lane.b32.xlu0 %v244, 64
    %v289 = vpop.permute.xlu0 %288
    %v292 = vsel %vm252, %v284, 0
    %294 = vmatpush.msra.mxu0 0.0
    %295 = vmatpush.msra.mxu0 0.0
    %296 = vmatpush.msra.mxu0 0.0
    %297 = vmatpush.msra.mxu0 0.0
    %298 = vmatpush.msra.mxu0 0.0
    %299 = vmatpush.msra.mxu0 0.0
    %300 = vmatpush.msra.mxu0 0.0
    %301 = vmatpush.msra.mxu0 0.0
    %302 = vmatpush.msra.mxu0 0.0
    %303 = vmatpush.msra.mxu0 0.0
    %304 = vmatpush.msra.mxu0 0.0
    %305 = vmatpush.msra.mxu0 0.0
    %306 = vmatpush.msra.mxu0 0.0
    %307 = vmatpush.msra.mxu0 0.0
    %308 = vmatpush.msra.mxu0 0.0
    %309 = vmatpush.msra.mxu0 %v289
    %310 = vmatmul.f32.gmra.mxu0 %v292
    %v311 = vpop.f32.mrf.mxu0
    %v312 = vadd.f32 0.0, %v311
    %313 = vdwg.mxu0
    %v314 = vrcp.pop %v287
    %v315 = vmul.f32 %v312, %v314
    %316 = vrot.lane.b32.xlu0 %v244, 120
    %v317 = vpop.permute.xlu0 %316
    %318 = vrot.lane.b32.xlu0 %v244, 88
    %v319 = vpop.permute.xlu0 %318
    %v320 = vsel %vm252, %v317, 0
    %v322 = vsel %vm252, %v319, 0
    %324 = vmatpush.xpose.msra.mxu0 0.0
    %325 = vmatpush.xpose.msra.mxu0 0.0
    %326 = vmatpush.xpose.msra.mxu0 0.0
    %327 = vmatpush.xpose.msra.mxu0 0.0
    %328 = vmatpush.xpose.msra.mxu0 0.0
    %329 = vmatpush.xpose.msra.mxu0 0.0
    %330 = vmatpush.xpose.msra.mxu0 0.0
    %331 = vmatpush.xpose.msra.mxu0 0.0
    %332 = vmatpush.xpose.msra.mxu0 0.0
    %333 = vmatpush.xpose.msra.mxu0 0.0
    %334 = vmatpush.xpose.msra.mxu0 0.0
    %335 = vmatpush.xpose.msra.mxu0 0.0
    %336 = vmatpush.xpose.msra.mxu0 0.0
    %337 = vmatpush.xpose.msra.mxu0 0.0
    %338 = vmatpush.xpose.msra.mxu0 0.0
    %339 = vmatpush.xpose.msra.mxu0 %v322
    %340 = vmatmul.f32.gmra.mxu0 %v320
    %v341 = vpop.f32.mrf.mxu0
    %v342 = vadd.f32 0.0, %v341
    %343 = vdwg.mxu0
    %v344 = vmul.f32 %v342, 0.35355338
    %v345 = vadd.f32 %v344, %v209
    %v346 = vsel %vm252, %v345, -inf
    %347 = vmax.xlane.f32.xlu0 %v346
    %v348 = vpop.xlane.xlu0 %347
    %v349 = vsub.f32 %v345, %v348
    %v350 = vmul.f32 %v349, 1.442695
    %v351 = vpow.pop %v350
    %v352 = vsel %vm252, %v351, 0.0
    %353 = vadd.xlane.f32.xlu0 %v352
    %v354 = vpop.xlane.xlu0 %353
    %355 = vrot.lane.b32.xlu0 %v244, 56
    %v356 = vpop.permute.xlu0 %355
    %v359 = vsel %vm252, %v351, 0
    %361 = vmatpush.msra.mxu0 0.0
    %362 = vmatpush.msra.mxu0 0.0
    %363 = vmatpush.msra.mxu0 0.0
    %364 = vmatpush.msra.mxu0 0.0
    %365 = vmatpush.msra.mxu0 0.0
    %366 = vmatpush.msra.mxu0 0.0
    %367 = vmatpush.msra.mxu0 0.0
    %368 = vmatpush.msra.mxu0 0.0
    %369 = vmatpush.msra.mxu0 0.0
    %370 = vmatpush.msra.mxu0 0.0
    %371 = vmatpush.msra.mxu0 0.0
    %372 = vmatpush.msra.mxu0 0.0
    %373 = vmatpush.msra.mxu0 0.0
    %374 = vmatpush.msra.mxu0 0.0
    %375 = vmatpush.msra.mxu0 0.0
    %376 = vmatpush.msra.mxu0 %v356
    %377 = vmatmul.f32.gmra.mxu0 %v359
    %v378 = vpop.f32.mrf.mxu0
    %v379 = vadd.f32 0.0, %v378
    %380 = vdwg.mxu0
    %v381 = vrcp.pop %v354
    %v382 = vmul.f32 %v379, %v381
    %383 = vrot.lane.b32.xlu0 %v244, 112
    %v384 = vpop.permute.xlu0 %383
    %385 = vrot.lane.b32.xlu0 %v244, 80
    %v386 = vpop.permute.xlu0 %385
    %v387 = vsel %vm252, %v384, 0
    %v389 = vsel %vm252, %v386, 0
    %391 = vmatpush.xpose.msra.mxu0 0.0
    %392 = vmatpush.xpose.msra.mxu0 0.0
    %393 = vmatpush.xpose.msra.mxu0 0.0
    %394 = vmatpush.xpose.msra.mxu0 0.0
    %395 = vmatpush.xpose.msra.mxu0 0.0
    %396 = vmatpush.xpose.msra.mxu0 0.0
    %397 = vmatpush.xpose.msra.mxu0 0.0
    %398 = vmatpush.xpose.msra.mxu0 0.0
    %399 = vmatpush.xpose.msra.mxu0 0.0
    %400 = vmatpush.xpose.msra.mxu0 0.0
    %401 = vmatpush.xpose.msra.mxu0 0.0
    %402 = vmatpush.xpose.msra.mxu0 0.0
    %403 = vmatpush.xpose.msra.mxu0 0.0
    %404 = vmatpush.xpose.msra.mxu0 0.0
    %405 = vmatpush.xpose.msra.mxu0 0.0
    %406 = vmatpush.xpose.msra.mxu0 %v389
    %407 = vmatmul.f32.gmra.mxu0 %v387
    %v408 = vpop.f32.mrf.mxu0
    %v409 = vadd.f32 0.0, %v408
    %410 = vdwg.mxu0
    %v411 = vmul.f32 %v409, 0.35355338
    %v412 = vadd.f32 %v411, %v209
    %v413 = vsel %vm252, %v412, -inf
    %414 = vmax.xlane.f32.xlu0 %v413
    %v415 = vpop.xlane.xlu0 %414
    %v416 = vsub.f32 %v412, %v415
    %v417 = vmul.f32 %v416, 1.442695
    %v418 = vpow.pop %v417
    %v419 = vsel %vm252, %v418, 0.0
    %420 = vadd.xlane.f32.xlu0 %v419
    %v421 = vpop.xlane.xlu0 %420
    %422 = vrot.lane.b32.xlu0 %v244, 48
    %v423 = vpop.permute.xlu0 %422
    %v426 = vsel %vm252, %v418, 0
    %428 = vmatpush.msra.mxu0 0.0
    %429 = vmatpush.msra.mxu0 0.0
    %430 = vmatpush.msra.mxu0 0.0
    %431 = vmatpush.msra.mxu0 0.0
    %432 = vmatpush.msra.mxu0 0.0
    %433 = vmatpush.msra.mxu0 0.0
    %434 = vmatpush.msra.mxu0 0.0
    %435 = vmatpush.msra.mxu0 0.0
    %436 = vmatpush.msra.mxu0 0.0
    %437 = vmatpush.msra.mxu0 0.0
    %438 = vmatpush.msra.mxu0 0.0
    %439 = vmatpush.msra.mxu0 0.0
    %440 = vmatpush.msra.mxu0 0.0
    %441 = vmatpush.msra.mxu0 0.0
    %442 = vmatpush.msra.mxu0 0.0
    %443 = vmatpush.msra.mxu0 %v423
    %444 = vmatmul.f32.gmra.mxu0 %v426
    %v445 = vpop.f32.mrf.mxu0
    %v446 = vadd.f32 0.0, %v445
    %447 = vdwg.mxu0
    %v448 = vrcp.pop %v421
    %v449 = vmul.f32 %v446, %v448
    %450 = vrot.lane.b32.xlu0 %v244, 104
    %v451 = vpop.permute.xlu0 %450
    %452 = vrot.lane.b32.xlu0 %v244, 72
    %v453 = vpop.permute.xlu0 %452
    %v454 = vsel %vm252, %v451, 0
    %v456 = vsel %vm252, %v453, 0
    %458 = vmatpush.xpose.msra.mxu0 0.0
    %459 = vmatpush.xpose.msra.mxu0 0.0
    %460 = vmatpush.xpose.msra.mxu0 0.0
    %461 = vmatpush.xpose.msra.mxu0 0.0
    %462 = vmatpush.xpose.msra.mxu0 0.0
    %463 = vmatpush.xpose.msra.mxu0 0.0
    %464 = vmatpush.xpose.msra.mxu0 0.0
    %465 = vmatpush.xpose.msra.mxu0 0.0
    %466 = vmatpush.xpose.msra.mxu0 0.0
    %467 = vmatpush.xpose.msra.mxu0 0.0
    %468 = vmatpush.xpose.msra.mxu0 0.0
    %469 = vmatpush.xpose.msra.mxu0 0.0
    %470 = vmatpush.xpose.msra.mxu0 0.0
    %471 = vmatpush.xpose.msra.mxu0 0.0
    %472 = vmatpush.xpose.msra.mxu0 0.0
    %473 = vmatpush.xpose.msra.mxu0 %v456
    %474 = vmatmul.f32.gmra.mxu0 %v454
    %v475 = vpop.f32.mrf.mxu0
    %v476 = vadd.f32 0.0, %v475
    %477 = vdwg.mxu0
    %v478 = vmul.f32 %v476, 0.35355338
    %v479 = vadd.f32 %v478, %v209
    %v480 = vsel %vm252, %v479, -inf
    %481 = vmax.xlane.f32.xlu0 %v480
    %v482 = vpop.xlane.xlu0 %481
    %v483 = vsub.f32 %v479, %v482
    %v484 = vmul.f32 %v483, 1.442695
    %v485 = vpow.pop %v484
    %v486 = vsel %vm252, %v485, 0.0
    %487 = vadd.xlane.f32.xlu0 %v486
    %v488 = vpop.xlane.xlu0 %487
    %489 = vrot.lane.b32.xlu0 %v244, 40
    %v490 = vpop.permute.xlu0 %489
    %v493 = vsel %vm252, %v485, 0
    %495 = vmatpush.msra.mxu0 0.0
    %496 = vmatpush.msra.mxu0 0.0
    %497 = vmatpush.msra.mxu0 0.0
    %498 = vmatpush.msra.mxu0 0.0
    %499 = vmatpush.msra.mxu0 0.0
    %500 = vmatpush.msra.mxu0 0.0
    %501 = vmatpush.msra.mxu0 0.0
    %502 = vmatpush.msra.mxu0 0.0
    %503 = vmatpush.msra.mxu0 0.0
    %504 = vmatpush.msra.mxu0 0.0
    %505 = vmatpush.msra.mxu0 0.0
    %506 = vmatpush.msra.mxu0 0.0
    %507 = vmatpush.msra.mxu0 0.0
    %508 = vmatpush.msra.mxu0 0.0
    %509 = vmatpush.msra.mxu0 0.0
    %510 = vmatpush.msra.mxu0 %v490
    %511 = vmatmul.f32.gmra.mxu0 %v493
    %v512 = vpop.f32.mrf.mxu0
    %v513 = vadd.f32 0.0, %v512
    %514 = vdwg.mxu0
    %v515 = vrcp.pop %v488
    %v516 = vmul.f32 %v513, %v515
    %518 = vrot.lane.b32.xlu0 %v382, 8
    %v519 = vpop.permute.xlu0 %518
    %522 = vrot.lane.b32.xlu0 %v449, 16
    %v523 = vpop.permute.xlu0 %522
    %526 = vrot.lane.b32.xlu0 %v516, 24
    %v527 = vpop.permute.xlu0 %526
    %v529 = vsel %vm252, %v315, %v519
    %vm530 = vcmask 130048
    %v531 = vsel %vm530, %v529, %v523
    %vm532 = vcmask 195584
    %v533 = vsel %vm532, %v531, %v527
    %535 = vrot.lane.b32.xlu0 %v247, 96
    %v536 = vpop.permute.xlu0 %535
    %v537 = vsel %vm252, %v247, 0
    %v539 = vsel %vm252, %v536, 0
    %541 = vmatpush.xpose.msra.mxu0 0.0
    %542 = vmatpush.xpose.msra.mxu0 0.0
    %543 = vmatpush.xpose.msra.mxu0 0.0
    %544 = vmatpush.xpose.msra.mxu0 0.0
    %545 = vmatpush.xpose.msra.mxu0 0.0
    %546 = vmatpush.xpose.msra.mxu0 0.0
    %547 = vmatpush.xpose.msra.mxu0 0.0
    %548 = vmatpush.xpose.msra.mxu0 0.0
    %549 = vmatpush.xpose.msra.mxu0 0.0
    %550 = vmatpush.xpose.msra.mxu0 0.0
    %551 = vmatpush.xpose.msra.mxu0 0.0
    %552 = vmatpush.xpose.msra.mxu0 0.0
    %553 = vmatpush.xpose.msra.mxu0 0.0
    %554 = vmatpush.xpose.msra.mxu0 0.0
    %555 = vmatpush.xpose.msra.mxu0 0.0
    %556 = vmatpush.xpose.msra.mxu0 %v539
    %557 = vmatmul.f32.gmra.mxu0 %v537
    %v558 = vpop.f32.mrf.mxu0
    %v559 = vadd.f32 0.0, %v558
    %560 = vdwg.mxu0
    %v561 = vmul.f32 %v559, 0.35355338
    %v562 = vadd.f32 %v561, %v211
    %v563 = vsel %vm252, %v562, -inf
    %564 = vmax.xlane.f32.xlu0 %v563
    %v565 = vpop.xlane.xlu0 %564
    %v566 = vsub.f32 %v562, %v565
    %v567 = vmul.f32 %v566, 1.442695
    %v568 = vpow.pop %v567
    %v569 = vsel %vm252, %v568, 0.0
    %570 = vadd.xlane.f32.xlu0 %v569
    %v571 = vpop.xlane.xlu0 %570
    %572 = vrot.lane.b32.xlu0 %v247, 64
    %v573 = vpop.permute.xlu0 %572
    %v576 = vsel %vm252, %v568, 0
    %578 = vmatpush.msra.mxu0 0.0
    %579 = vmatpush.msra.mxu0 0.0
    %580 = vmatpush.msra.mxu0 0.0
    %581 = vmatpush.msra.mxu0 0.0
    %582 = vmatpush.msra.mxu0 0.0
    %583 = vmatpush.msra.mxu0 0.0
    %584 = vmatpush.msra.mxu0 0.0
    %585 = vmatpush.msra.mxu0 0.0
    %586 = vmatpush.msra.mxu0 0.0
    %587 = vmatpush.msra.mxu0 0.0
    %588 = vmatpush.msra.mxu0 0.0
    %589 = vmatpush.msra.mxu0 0.0
    %590 = vmatpush.msra.mxu0 0.0
    %591 = vmatpush.msra.mxu0 0.0
    %592 = vmatpush.msra.mxu0 0.0
    %593 = vmatpush.msra.mxu0 %v573
    %594 = vmatmul.f32.gmra.mxu0 %v576
    %v595 = vpop.f32.mrf.mxu0
    %v596 = vadd.f32 0.0, %v595
    %597 = vdwg.mxu0
    %v598 = vrcp.pop %v571
    %v599 = vmul.f32 %v596, %v598
    %600 = vrot.lane.b32.xlu0 %v247, 120
    %v601 = vpop.permute.xlu0 %600
    %602 = vrot.lane.b32.xlu0 %v247, 88
    %v603 = vpop.permute.xlu0 %602
    %v604 = vsel %vm252, %v601, 0
    %v606 = vsel %vm252, %v603, 0
    %608 = vmatpush.xpose.msra.mxu0 0.0
    %609 = vmatpush.xpose.msra.mxu0 0.0
    %610 = vmatpush.xpose.msra.mxu0 0.0
    %611 = vmatpush.xpose.msra.mxu0 0.0
    %612 = vmatpush.xpose.msra.mxu0 0.0
    %613 = vmatpush.xpose.msra.mxu0 0.0
    %614 = vmatpush.xpose.msra.mxu0 0.0
    %615 = vmatpush.xpose.msra.mxu0 0.0
    %616 = vmatpush.xpose.msra.mxu0 0.0
    %617 = vmatpush.xpose.msra.mxu0 0.0
    %618 = vmatpush.xpose.msra.mxu0 0.0
    %619 = vmatpush.xpose.msra.mxu0 0.0
    %620 = vmatpush.xpose.msra.mxu0 0.0
    %621 = vmatpush.xpose.msra.mxu0 0.0
    %622 = vmatpush.xpose.msra.mxu0 0.0
    %623 = vmatpush.xpose.msra.mxu0 %v606
    %624 = vmatmul.f32.gmra.mxu0 %v604
    %v625 = vpop.f32.mrf.mxu0
    %v626 = vadd.f32 0.0, %v625
    %627 = vdwg.mxu0
    %v628 = vmul.f32 %v626, 0.35355338
    %v629 = vadd.f32 %v628, %v211
    %v630 = vsel %vm252, %v629, -inf
    %631 = vmax.xlane.f32.xlu0 %v630
    %v632 = vpop.xlane.xlu0 %631
    %v633 = vsub.f32 %v629, %v632
    %v634 = vmul.f32 %v633, 1.442695
    %v635 = vpow.pop %v634
    %v636 = vsel %vm252, %v635, 0.0
    %637 = vadd.xlane.f32.xlu0 %v636
    %v638 = vpop.xlane.xlu0 %637
    %639 = vrot.lane.b32.xlu0 %v247, 56
    %v640 = vpop.permute.xlu0 %639
    %v643 = vsel %vm252, %v635, 0
    %645 = vmatpush.msra.mxu0 0.0
    %646 = vmatpush.msra.mxu0 0.0
    %647 = vmatpush.msra.mxu0 0.0
    %648 = vmatpush.msra.mxu0 0.0
    %649 = vmatpush.msra.mxu0 0.0
    %650 = vmatpush.msra.mxu0 0.0
    %651 = vmatpush.msra.mxu0 0.0
    %652 = vmatpush.msra.mxu0 0.0
    %653 = vmatpush.msra.mxu0 0.0
    %654 = vmatpush.msra.mxu0 0.0
    %655 = vmatpush.msra.mxu0 0.0
    %656 = vmatpush.msra.mxu0 0.0
    %657 = vmatpush.msra.mxu0 0.0
    %658 = vmatpush.msra.mxu0 0.0
    %659 = vmatpush.msra.mxu0 0.0
    %660 = vmatpush.msra.mxu0 %v640
    %661 = vmatmul.f32.gmra.mxu0 %v643
    %v662 = vpop.f32.mrf.mxu0
    %v663 = vadd.f32 0.0, %v662
    %664 = vdwg.mxu0
    %v665 = vrcp.pop %v638
    %v666 = vmul.f32 %v663, %v665
    %667 = vrot.lane.b32.xlu0 %v247, 112
    %v668 = vpop.permute.xlu0 %667
    %669 = vrot.lane.b32.xlu0 %v247, 80
    %v670 = vpop.permute.xlu0 %669
    %v671 = vsel %vm252, %v668, 0
    %v673 = vsel %vm252, %v670, 0
    %675 = vmatpush.xpose.msra.mxu0 0.0
    %676 = vmatpush.xpose.msra.mxu0 0.0
    %677 = vmatpush.xpose.msra.mxu0 0.0
    %678 = vmatpush.xpose.msra.mxu0 0.0
    %679 = vmatpush.xpose.msra.mxu0 0.0
    %680 = vmatpush.xpose.msra.mxu0 0.0
    %681 = vmatpush.xpose.msra.mxu0 0.0
    %682 = vmatpush.xpose.msra.mxu0 0.0
    %683 = vmatpush.xpose.msra.mxu0 0.0
    %684 = vmatpush.xpose.msra.mxu0 0.0
    %685 = vmatpush.xpose.msra.mxu0 0.0
    %686 = vmatpush.xpose.msra.mxu0 0.0
    %687 = vmatpush.xpose.msra.mxu0 0.0
    %688 = vmatpush.xpose.msra.mxu0 0.0
    %689 = vmatpush.xpose.msra.mxu0 0.0
    %690 = vmatpush.xpose.msra.mxu0 %v673
    %691 = vmatmul.f32.gmra.mxu0 %v671
    %v692 = vpop.f32.mrf.mxu0
    %v693 = vadd.f32 0.0, %v692
    %694 = vdwg.mxu0
    %v695 = vmul.f32 %v693, 0.35355338
    %v696 = vadd.f32 %v695, %v211
    %v697 = vsel %vm252, %v696, -inf
    %698 = vmax.xlane.f32.xlu0 %v697
    %v699 = vpop.xlane.xlu0 %698
    %v700 = vsub.f32 %v696, %v699
    %v701 = vmul.f32 %v700, 1.442695
    %v702 = vpow.pop %v701
    %v703 = vsel %vm252, %v702, 0.0
    %704 = vadd.xlane.f32.xlu0 %v703
    %v705 = vpop.xlane.xlu0 %704
    %706 = vrot.lane.b32.xlu0 %v247, 48
    %v707 = vpop.permute.xlu0 %706
    %v710 = vsel %vm252, %v702, 0
    %712 = vmatpush.msra.mxu0 0.0
    %713 = vmatpush.msra.mxu0 0.0
    %714 = vmatpush.msra.mxu0 0.0
    %715 = vmatpush.msra.mxu0 0.0
    %716 = vmatpush.msra.mxu0 0.0
    %717 = vmatpush.msra.mxu0 0.0
    %718 = vmatpush.msra.mxu0 0.0
    %719 = vmatpush.msra.mxu0 0.0
    %720 = vmatpush.msra.mxu0 0.0
    %721 = vmatpush.msra.mxu0 0.0
    %722 = vmatpush.msra.mxu0 0.0
    %723 = vmatpush.msra.mxu0 0.0
    %724 = vmatpush.msra.mxu0 0.0
    %725 = vmatpush.msra.mxu0 0.0
    %726 = vmatpush.msra.mxu0 0.0
    %727 = vmatpush.msra.mxu0 %v707
    %728 = vmatmul.f32.gmra.mxu0 %v710
    %v729 = vpop.f32.mrf.mxu0
    %v730 = vadd.f32 0.0, %v729
    %731 = vdwg.mxu0
    %v732 = vrcp.pop %v705
    %v733 = vmul.f32 %v730, %v732
    %734 = vrot.lane.b32.xlu0 %v247, 104
    %v735 = vpop.permute.xlu0 %734
    %736 = vrot.lane.b32.xlu0 %v247, 72
    %v737 = vpop.permute.xlu0 %736
    %v738 = vsel %vm252, %v735, 0
    %v740 = vsel %vm252, %v737, 0
    %742 = vmatpush.xpose.msra.mxu0 0.0
    %743 = vmatpush.xpose.msra.mxu0 0.0
    %744 = vmatpush.xpose.msra.mxu0 0.0
    %745 = vmatpush.xpose.msra.mxu0 0.0
    %746 = vmatpush.xpose.msra.mxu0 0.0
    %747 = vmatpush.xpose.msra.mxu0 0.0
    %748 = vmatpush.xpose.msra.mxu0 0.0
    %749 = vmatpush.xpose.msra.mxu0 0.0
    %750 = vmatpush.xpose.msra.mxu0 0.0
    %751 = vmatpush.xpose.msra.mxu0 0.0
    %752 = vmatpush.xpose.msra.mxu0 0.0
    %753 = vmatpush.xpose.msra.mxu0 0.0
    %754 = vmatpush.xpose.msra.mxu0 0.0
    %755 = vmatpush.xpose.msra.mxu0 0.0
    %756 = vmatpush.xpose.msra.mxu0 0.0
    %757 = vmatpush.xpose.msra.mxu0 %v740
    %758 = vmatmul.f32.gmra.mxu0 %v738
    %v759 = vpop.f32.mrf.mxu0
    %v760 = vadd.f32 0.0, %v759
    %761 = vdwg.mxu0
    %v762 = vmul.f32 %v760, 0.35355338
    %v763 = vadd.f32 %v762, %v211
    %v764 = vsel %vm252, %v763, -inf
    %765 = vmax.xlane.f32.xlu0 %v764
    %v766 = vpop.xlane.xlu0 %765
    %v767 = vsub.f32 %v763, %v766
    %v768 = vmul.f32 %v767, 1.442695
    %v769 = vpow.pop %v768
    %v770 = vsel %vm252, %v769, 0.0
    %771 = vadd.xlane.f32.xlu0 %v770
    %v772 = vpop.xlane.xlu0 %771
    %773 = vrot.lane.b32.xlu0 %v247, 40
    %v774 = vpop.permute.xlu0 %773
    %v777 = vsel %vm252, %v769, 0
    %779 = vmatpush.msra.mxu0 0.0
    %780 = vmatpush.msra.mxu0 0.0
    %781 = vmatpush.msra.mxu0 0.0
    %782 = vmatpush.msra.mxu0 0.0
    %783 = vmatpush.msra.mxu0 0.0
    %784 = vmatpush.msra.mxu0 0.0
    %785 = vmatpush.msra.mxu0 0.0
    %786 = vmatpush.msra.mxu0 0.0
    %787 = vmatpush.msra.mxu0 0.0
    %788 = vmatpush.msra.mxu0 0.0
    %789 = vmatpush.msra.mxu0 0.0
    %790 = vmatpush.msra.mxu0 0.0
    %791 = vmatpush.msra.mxu0 0.0
    %792 = vmatpush.msra.mxu0 0.0
    %793 = vmatpush.msra.mxu0 0.0
    %794 = vmatpush.msra.mxu0 %v774
    %795 = vmatmul.f32.gmra.mxu0 %v777
    %v796 = vpop.f32.mrf.mxu0
    %v797 = vadd.f32 0.0, %v796
    %798 = vdwg.mxu0
    %v799 = vrcp.pop %v772
    %v800 = vmul.f32 %v797, %v799
    %802 = vrot.lane.b32.xlu0 %v666, 8
    %v803 = vpop.permute.xlu0 %802
    %806 = vrot.lane.b32.xlu0 %v733, 16
    %v807 = vpop.permute.xlu0 %806
    %810 = vrot.lane.b32.xlu0 %v800, 24
    %v811 = vpop.permute.xlu0 %810
    %v813 = vsel %vm252, %v599, %v803
    %v814 = vsel %vm530, %v813, %v807
    %v815 = vsel %vm532, %v814, %v811
    %v816 = vld [vmem:[%s6] sm:$0xff]
    %v817 = vld [vmem:[%s6 + $0x8] sm:$0xff]
    %v818 = vld [vmem:[%s6 + $0x10] sm:$0xff]
    %v819 = vld [vmem:[%s6 + $0x18] sm:$0xff]
    %v820 = vld [vmem:[%s7] sm:$0x1]
    %v822 = vperm.slane %v820, 0
    %v825 = vsel %vm146, %v533, 0
    %v828 = vsel %vm146, %v815, 0
    %830 = vmatpush.msra.mxu0 0.0
    %831 = vmatpush.msra.mxu0 0.0
    %832 = vmatpush.msra.mxu0 0.0
    %833 = vmatpush.msra.mxu0 0.0
    %834 = vmatpush.msra.mxu0 0.0
    %835 = vmatpush.msra.mxu0 0.0
    %836 = vmatpush.msra.mxu0 0.0
    %837 = vmatpush.msra.mxu0 0.0
    %838 = vmatpush.msra.mxu0 0.0
    %839 = vmatpush.msra.mxu0 0.0
    %840 = vmatpush.msra.mxu0 0.0
    %841 = vmatpush.msra.mxu0 0.0
    %842 = vmatpush.msra.mxu0 %v819
    %843 = vmatpush.msra.mxu0 %v818
    %844 = vmatpush.msra.mxu0 %v817
    %845 = vmatpush.msra.mxu0 %v816
    %846 = vmatmul.f32.gmra.mxu0 %v825
    %v847 = vpop.f32.mrf.mxu0
    %v848 = vadd.f32 %v822, %v847
    %849 = vmatmul.f32.gmra.mxu0 %v828
    %v850 = vpop.f32.mrf.mxu0
    %v851 = vadd.f32 %v822, %v850
    %852 = vdwg.mxu0
    %v853 = vadd.f32 %v848, %v206
    %v854 = vadd.f32 %v851, %v207
    %v855 = vld [vmem:[#allocation10] sm:$0x1]
    %v856 = vld [vmem:[%s9] sm:$0x1]
    %v857 = vsel %vm146, %v853, 0.0
    %858 = vadd.xlane.f32.xlu0 %v857
    %v859 = vpop.xlane.xlu0 %858
    %v860 = vsel %vm146, %v854, 0.0
    %861 = vadd.xlane.f32.xlu0 %v860
    %v862 = vpop.xlane.xlu0 %861
    %v863 = vmul.f32 %v859, %v159
    %v864 = vmul.f32 %v862, %v159
    %v865 = vsub.f32 %v853, %v863
    %v866 = vsub.f32 %v854, %v864
    %v867 = vmul.f32 %v865, %v865
    %v868 = vmul.f32 %v866, %v866
    %v869 = vsel %vm146, %v867, 0.0
    %870 = vadd.xlane.f32.xlu0 %v869
    %v871 = vpop.xlane.xlu0 %870
    %v872 = vsel %vm146, %v868, 0.0
    %873 = vadd.xlane.f32.xlu0 %v872
    %v874 = vpop.xlane.xlu0 %873
    %v875 = vmul.f32 %v871, %v159
    %v876 = vmul.f32 %v874, %v159
    %v877 = vadd.f32 %v875, 1e-05
    %v878 = vadd.f32 %v876, 1e-05
    %v879 = vrsqrt.pop %v877
    %v880 = vmul.f32 %v879, %v877
    %v881 = vmul.f32 %v880, %v879
    %v882 = vmul.f32 0.5, %v881
    %v883 = vsub.f32 1.5, %v882
    %v884 = vmul.f32 %v879, %v883
    %vm885 = vweird.f32 %v877
    %vm886 = vweird.f32 %v879
    %vm887 = vmor %vm885, %vm886
    %v888 = vsel %vm887, %v879, %v884
    %v889 = vrsqrt.pop %v878
    %v890 = vmul.f32 %v889, %v878
    %v891 = vmul.f32 %v890, %v889
    %v892 = vmul.f32 0.5, %v891
    %v893 = vsub.f32 1.5, %v892
    %v894 = vmul.f32 %v889, %v893
    %vm895 = vweird.f32 %v878
    %vm896 = vweird.f32 %v889
    %vm897 = vmor %vm895, %vm896
    %v898 = vsel %vm897, %v889, %v894
    %v899 = vmul.f32 %v865, %v888
    %v900 = vmul.f32 %v866, %v898
    %v902 = vperm.slane %v855, 0
    %v904 = vmul.f32 %v899, %v902
    %v905 = vmul.f32 %v900, %v902
    %v907 = vperm.slane %v856, 0
    %v909 = vadd.f32 %v904, %v907
    %v910 = vadd.f32 %v905, %v907
    %v911 = vld [vmem:[%s10] sm:$0xff]
    %v912 = vld [vmem:[%s10 + $0x8] sm:$0xff]
    %v913 = vld [vmem:[%s10 + $0x10] sm:$0xff]
    %v914 = vld [vmem:[%s10 + $0x18] sm:$0xff]
    %v915 = vld [vmem:[%s11] sm:$0x1]
    %v917 = vperm.slane %v915, 0
    %v920 = vsel %vm146, %v909, 0
    %v923 = vsel %vm146, %v910, 0
    %925 = vmatpush.msra.mxu0 0.0
    %926 = vmatpush.msra.mxu0 0.0
    %927 = vmatpush.msra.mxu0 0.0
    %928 = vmatpush.msra.mxu0 0.0
    %929 = vmatpush.msra.mxu0 0.0
    %930 = vmatpush.msra.mxu0 0.0
    %931 = vmatpush.msra.mxu0 0.0
    %932 = vmatpush.msra.mxu0 0.0
    %933 = vmatpush.msra.mxu0 0.0
    %934 = vmatpush.msra.mxu0 0.0
    %935 = vmatpush.msra.mxu0 0.0
    %936 = vmatpush.msra.mxu0 0.0
    %937 = vmatpush.msra.mxu0 %v914
    %938 = vmatpush.msra.mxu0 %v913
    %939 = vmatpush.msra.mxu0 %v912
    %940 = vmatpush.msra.mxu0 %v911
    %941 = vmatmul.f32.gmra.mxu0 %v920
    %v942 = vpop.f32.mrf.mxu0
    %v943 = vadd.f32 %v917, %v942
    %944 = vmatmul.f32.gmra.mxu0 %v923
    %v945 = vpop.f32.mrf.mxu0
    %v946 = vadd.f32 %v917, %v945
    %947 = vdwg.mxu0
    %v948 = vmul.f32 %v943, 0.5
    %v949 = vmul.f32 %v946, 0.5
    %v950 = vmul.f32 %v943, 0.044715
    %v951 = vmul.f32 %v946, 0.044715
    %v952 = vmul.f32 %v950, %v943
    %v953 = vmul.f32 %v951, %v946
    %v954 = vmul.f32 %v952, %v943
    %v955 = vmul.f32 %v953, %v946
    %v956 = vadd.f32 %v943, %v954
    %v957 = vadd.f32 %v946, %v955
    %v958 = vmul.f32 %v956, 0.7978846
    %v959 = vmul.f32 %v957, 0.7978846
    %v960 = vtanh.pop %v958
    %v961 = vtanh.pop %v959
    %v962 = vadd.f32 %v960, 1.0
    %v963 = vadd.f32 %v961, 1.0
    %v964 = vmul.f32 %v948, %v962
    %v965 = vmul.f32 %v949, %v963
    %v966 = vld [vmem:[%s12] sm:$0xff]
    %v967 = vld [vmem:[%s12 + $0x8] sm:$0xff]
    %v968 = vld [vmem:[%s12 + $0x10] sm:$0xff]
    %v969 = vld [vmem:[%s12 + $0x18] sm:$0xff]
    %v970 = vld [vmem:[%s12 + $0x20] sm:$0xff]
    %v971 = vld [vmem:[%s12 + $0x28] sm:$0xff]
    %v972 = vld [vmem:[%s12 + $0x30] sm:$0xff]
    %v973 = vld [vmem:[%s12 + $0x38] sm:$0xff]
    %v974 = vld [vmem:[%s13] sm:$0x1]
    %v976 = vperm.slane %v974, 0
    %vm978 = vcmask 523264
    %v980 = vsel %vm978, %v964, 0
    %v983 = vsel %vm978, %v965, 0
    %985 = vmatpush.msra.mxu0 0.0
    %986 = vmatpush.msra.mxu0 0.0
    %987 = vmatpush.msra.mxu0 0.0
    %988 = vmatpush.msra.mxu0 0.0
    %989 = vmatpush.msra.mxu0 0.0
    %990 = vmatpush.msra.mxu0 0.0
    %991 = vmatpush.msra.mxu0 0.0
    %992 = vmatpush.msra.mxu0 0.0
    %993 = vmatpush.msra.mxu0 %v973
    %994 = vmatpush.msra.mxu0 %v972
    %995 = vmatpush.msra.mxu0 %v971
    %996 = vmatpush.msra.mxu0 %v970
    %997 = vmatpush.msra.mxu0 %v969
    %998 = vmatpush.msra.mxu0 %v968
    %999 = vmatpush.msra.mxu0 %v967
    %1000 = vmatpush.msra.mxu0 %v966
    %1001 = vmatmul.f32.gmra.mxu0 %v980
    %v1002 = vpop.f32.mrf.mxu0
    %v1003 = vadd.f32 %v976, %v1002
    %1004 = vmatmul.f32.gmra.mxu0 %v983
    %v1005 = vpop.f32.mrf.mxu0
    %v1006 = vadd.f32 %v976, %v1005
    %1007 = vdwg.mxu0
    %v1008 = vadd.f32 %v1003, %v909
    %v1009 = vadd.f32 %v1006, %v910
    %v1010 = vld [vmem:[#allocation11] sm:$0x1]
    %v1011 = vld [vmem:[%s15] sm:$0x1]
    %v1012 = vsel %vm146, %v1008, 0.0
    %1013 = vadd.xlane.f32.xlu0 %v1012
    %v1014 = vpop.xlane.xlu0 %1013
    %v1015 = vsel %vm146, %v1009, 0.0
    %1016 = vadd.xlane.f32.xlu0 %v1015
    %v1017 = vpop.xlane.xlu0 %1016
    %v1018 = vmul.f32 %v1014, %v159
    %v1019 = vmul.f32 %v1017, %v159
    %v1020 = vsub.f32 %v1008, %v1018
    %v1021 = vsub.f32 %v1009, %v1019
    %v1022 = vmul.f32 %v1020, %v1020
    %v1023 = vmul.f32 %v1021, %v1021
    %v1024 = vsel %vm146, %v1022, 0.0
    %1025 = vadd.xlane.f32.xlu0 %v1024
    %v1026 = vpop.xlane.xlu0 %1025
    %v1027 = vsel %vm146, %v1023, 0.0
    %1028 = vadd.xlane.f32.xlu0 %v1027
    %v1029 = vpop.xlane.xlu0 %1028
    %v1030 = vmul.f32 %v1026, %v159
    %v1031 = vmul.f32 %v1029, %v159
    %v1032 = vadd.f32 %v1030, 1e-05
    %v1033 = vadd.f32 %v1031, 1e-05
    %v1034 = vrsqrt.pop %v1032
    %v1035 = vmul.f32 %v1034, %v1032
    %v1036 = vmul.f32 %v1035, %v1034
    %v1037 = vmul.f32 0.5, %v1036
    %v1038 = vsub.f32 1.5, %v1037
    %v1039 = vmul.f32 %v1034, %v1038
    %vm1040 = vweird.f32 %v1032
    %vm1041 = vweird.f32 %v1034
    %vm1042 = vmor %vm1040, %vm1041
    %v1043 = vsel %vm1042, %v1034, %v1039
    %v1044 = vrsqrt.pop %v1033
    %v1045 = vmul.f32 %v1044, %v1033
    %v1046 = vmul.f32 %v1045, %v1044
    %v1047 = vmul.f32 0.5, %v1046
    %v1048 = vsub.f32 1.5, %v1047
    %v1049 = vmul.f32 %v1044, %v1048
    %vm1050 = vweird.f32 %v1033
    %vm1051 = vweird.f32 %v1044
    %vm1052 = vmor %vm1050, %vm1051
    %v1053 = vsel %vm1052, %v1044, %v1049
    %v1054 = vmul.f32 %v1020, %v1043
    %v1055 = vmul.f32 %v1021, %v1053
    %v1057 = vperm.slane %v1010, 0
    %v1059 = vmul.f32 %v1054, %v1057
    %v1060 = vmul.f32 %v1055, %v1057
    %v1062 = vperm.slane %v1011, 0
    %v1064 = vadd.f32 %v1059, %v1062
    %v1065 = vadd.f32 %v1060, %v1062
    %s1066 = scalar_lea.vmem %s4, 32
    %v1067 = vld [vmem:[%s1066] sm:$0xff]
    %v1068 = vld [vmem:[%s1066 + $0x8] sm:$0xff]
    %v1069 = vld [vmem:[%s1066 + $0x10] sm:$0xff]
    %v1070 = vld [vmem:[%s1066 + $0x18] sm:$0xff]
    %s1071 = scalar_lea.vmem %s5, 1
    %v1072 = vld [vmem:[%s1071] sm:$0x1]
    %v1074 = vperm.slane %v1072, 0
    %v1077 = vsel %vm146, %v1064, 0
    %v1080 = vsel %vm146, %v1065, 0
    %1082 = vmatpush.msra.mxu0 0.0
    %1083 = vmatpush.msra.mxu0 0.0
    %1084 = vmatpush.msra.mxu0 0.0
    %1085 = vmatpush.msra.mxu0 0.0
    %1086 = vmatpush.msra.mxu0 0.0
    %1087 = vmatpush.msra.mxu0 0.0
    %1088 = vmatpush.msra.mxu0 0.0
    %1089 = vmatpush.msra.mxu0 0.0
    %1090 = vmatpush.msra.mxu0 0.0
    %1091 = vmatpush.msra.mxu0 0.0
    %1092 = vmatpush.msra.mxu0 0.0
    %1093 = vmatpush.msra.mxu0 0.0
    %1094 = vmatpush.msra.mxu0 %v1070
    %1095 = vmatpush.msra.mxu0 %v1069
    %1096 = vmatpush.msra.mxu0 %v1068
    %1097 = vmatpush.msra.mxu0 %v1067
    %1098 = vmatmul.f32.gmra.mxu0 %v1077
    %v1099 = vpop.f32.mrf.mxu0
    %v1100 = vadd.f32 %v1074, %v1099
    %1101 = vmatmul.f32.gmra.mxu0 %v1080
    %v1102 = vpop.f32.mrf.mxu0
    %v1103 = vadd.f32 %v1074, %v1102
    %1104 = vdwg.mxu0
    %1106 = vrot.lane.b32.xlu0 %v1100, 96
    %v1107 = vpop.permute.xlu0 %1106
    %v1108 = vsel %vm252, %v1100, 0
    %v1110 = vsel %vm252, %v1107, 0
    %1112 = vmatpush.xpose.msra.mxu0 0.0
    %1113 = vmatpush.xpose.msra.mxu0 0.0
    %1114 = vmatpush.xpose.msra.mxu0 0.0
    %1115 = vmatpush.xpose.msra.mxu0 0.0
    %1116 = vmatpush.xpose.msra.mxu0 0.0
    %1117 = vmatpush.xpose.msra.mxu0 0.0
    %1118 = vmatpush.xpose.msra.mxu0 0.0
    %1119 = vmatpush.xpose.msra.mxu0 0.0
    %1120 = vmatpush.xpose.msra.mxu0 0.0
    %1121 = vmatpush.xpose.msra.mxu0 0.0
    %1122 = vmatpush.xpose.msra.mxu0 0.0
    %1123 = vmatpush.xpose.msra.mxu0 0.0
    %1124 = vmatpush.xpose.msra.mxu0 0.0
    %1125 = vmatpush.xpose.msra.mxu0 0.0
    %1126 = vmatpush.xpose.msra.mxu0 0.0
    %1127 = vmatpush.xpose.msra.mxu0 %v1110
    %1128 = vmatmul.f32.gmra.mxu0 %v1108
    %v1129 = vpop.f32.mrf.mxu0
    %v1130 = vadd.f32 0.0, %v1129
    %1131 = vdwg.mxu0
    %v1132 = vmul.f32 %v1130, 0.35355338
    %v1133 = vadd.f32 %v1132, %v209
    %v1134 = vsel %vm252, %v1133, -inf
    %1135 = vmax.xlane.f32.xlu0 %v1134
    %v1136 = vpop.xlane.xlu0 %1135
    %v1137 = vsub.f32 %v1133, %v1136
    %v1138 = vmul.f32 %v1137, 1.442695
    %v1139 = vpow.pop %v1138
    %v1140 = vsel %vm252, %v1139, 0.0
    %1141 = vadd.xlane.f32.xlu0 %v1140
    %v1142 = vpop.xlane.xlu0 %1141
    %1143 = vrot.lane.b32.xlu0 %v1100, 64
    %v1144 = vpop.permute.xlu0 %1143
    %v1147 = vsel %vm252, %v1139, 0
    %1149 = vmatpush.msra.mxu0 0.0
    %1150 = vmatpush.msra.mxu0 0.0
    %1151 = vmatpush.msra.mxu0 0.0
    %1152 = vmatpush.msra.mxu0 0.0
    %1153 = vmatpush.msra.mxu0 0.0
    %1154 = vmatpush.msra.mxu0 0.0
    %1155 = vmatpush.msra.mxu0 0.0
    %1156 = vmatpush.msra.mxu0 0.0
    %1157 = vmatpush.msra.mxu0 0.0
    %1158 = vmatpush.msra.mxu0 0.0
    %1159 = vmatpush.msra.mxu0 0.0
    %1160 = vmatpush.msra.mxu0 0.0
    %1161 = vmatpush.msra.mxu0 0.0
    %1162 = vmatpush.msra.mxu0 0.0
    %1163 = vmatpush.msra.mxu0 0.0
    %1164 = vmatpush.msra.mxu0 %v1144
    %1165 = vmatmul.f32.gmra.mxu0 %v1147
    %v1166 = vpop.f32.mrf.mxu0
    %v1167 = vadd.f32 0.0, %v1166
    %1168 = vdwg.mxu0
    %v1169 = vrcp.pop %v1142
    %v1170 = vmul.f32 %v1167, %v1169
    %1171 = vrot.lane.b32.xlu0 %v1100, 120
    %v1172 = vpop.permute.xlu0 %1171
    %1173 = vrot.lane.b32.xlu0 %v1100, 88
    %v1174 = vpop.permute.xlu0 %1173
    %v1175 = vsel %vm252, %v1172, 0
    %v1177 = vsel %vm252, %v1174, 0
    %1179 = vmatpush.xpose.msra.mxu0 0.0
    %1180 = vmatpush.xpose.msra.mxu0 0.0
    %1181 = vmatpush.xpose.msra.mxu0 0.0
    %1182 = vmatpush.xpose.msra.mxu0 0.0
    %1183 = vmatpush.xpose.msra.mxu0 0.0
    %1184 = vmatpush.xpose.msra.mxu0 0.0
    %1185 = vmatpush.xpose.msra.mxu0 0.0
    %1186 = vmatpush.xpose.msra.mxu0 0.0
    %1187 = vmatpush.xpose.msra.mxu0 0.0
    %1188 = vmatpush.xpose.msra.mxu0 0.0
    %1189 = vmatpush.xpose.msra.mxu0 0.0
    %1190 = vmatpush.xpose.msra.mxu0 0.0
    %1191 = vmatpush.xpose.msra.mxu0 0.0
    %1192 = vmatpush.xpose.msra.mxu0 0.0
    %1193 = vmatpush.xpose.msra.mxu0 0.0
    %1194 = vmatpush.xpose.msra.mxu0 %v1177
    %1195 = vmatmul.f32.gmra.mxu0 %v1175
    %v1196 = vpop.f32.mrf.mxu0
    %v1197 = vadd.f32 0.0, %v1196
    %1198 = vdwg.mxu0
    %v1199 = vmul.f32 %v1197, 0.35355338
    %v1200 = vadd.f32 %v1199, %v209
    %v1201 = vsel %vm252, %v1200, -inf
    %1202 = vmax.xlane.f32.xlu0 %v1201
    %v1203 = vpop.xlane.xlu0 %1202
    %v1204 = vsub.f32 %v1200, %v1203
    %v1205 = vmul.f32 %v1204, 1.442695
    %v1206 = vpow.pop %v1205
    %v1207 = vsel %vm252, %v1206, 0.0
    %1208 = vadd.xlane.f32.xlu0 %v1207
    %v1209 = vpop.xlane.xlu0 %1208
    %1210 = vrot.lane.b32.xlu0 %v1100, 56
    %v1211 = vpop.permute.xlu0 %1210
    %v1214 = vsel %vm252, %v1206, 0
    %1216 = vmatpush.msra.mxu0 0.0
    %1217 = vmatpush.msra.mxu0 0.0
    %1218 = vmatpush.msra.mxu0 0.0
    %1219 = vmatpush.msra.mxu0 0.0
    %1220 = vmatpush.msra.mxu0 0.0
    %1221 = vmatpush.msra.mxu0 0.0
    %1222 = vmatpush.msra.mxu0 0.0
    %1223 = vmatpush.msra.mxu0 0.0
    %1224 = vmatpush.msra.mxu0 0.0
    %1225 = vmatpush.msra.mxu0 0.0
    %1226 = vmatpush.msra.mxu0 0.0
    %1227 = vmatpush.msra.mxu0 0.0
    %1228 = vmatpush.msra.mxu0 0.0
    %1229 = vmatpush.msra.mxu0 0.0
    %1230 = vmatpush.msra.mxu0 0.0
    %1231 = vmatpush.msra.mxu0 %v1211
    %1232 = vmatmul.f32.gmra.mxu0 %v1214
    %v1233 = vpop.f32.mrf.mxu0
    %v1234 = vadd.f32 0.0, %v1233
    %1235 = vdwg.mxu0
    %v1236 = vrcp.pop %v1209
    %v1237 = vmul.f32 %v1234, %v1236
    %1238 = vrot.lane.b32.xlu0 %v1100, 112
    %v1239 = vpop.permute.xlu0 %1238
    %1240 = vrot.lane.b32.xlu0 %v1100, 80
    %v1241 = vpop.permute.xlu0 %1240
    %v1242 = vsel %vm252, %v1239, 0
    %v1244 = vsel %vm252, %v1241, 0
    %1246 = vmatpush.xpose.msra.mxu0 0.0
    %1247 = vmatpush.xpose.msra.mxu0 0.0
    %1248 = vmatpush.xpose.msra.mxu0 0.0
    %1249 = vmatpush.xpose.msra.mxu0 0.0
    %1250 = vmatpush.xpose.msra.mxu0 0.0
    %1251 = vmatpush.xpose.msra.mxu0 0.0
    %1252 = vmatpush.xpose.msra.mxu0 0.0
    %1253 = vmatpush.xpose.msra.mxu0 0.0
    %1254 = vmatpush.xpose.msra.mxu0 0.0
    %1255 = vmatpush.xpose.msra.mxu0 0.0
    %1256 = vmatpush.xpose.msra.mxu0 0.0
    %1257 = vmatpush.xpose.msra.mxu0 0.0
    %1258 = vmatpush.xpose.msra.mxu0 0.0
    %1259 = vmatpush.xpose.msra.mxu0 0.0
    %1260 = vmatpush.xpose.msra.mxu0 0.0
    %1261 = vmatpush.xpose.msra.mxu0 %v1244
    %1262 = vmatmul.f32.gmra.mxu0 %v1242
    %v1263 = vpop.f32.mrf.mxu0
    %v1264 = vadd.f32 0.0, %v1263
    %1265 = vdwg.mxu0
    %v1266 = vmul.f32 %v1264, 0.35355338
    %v1267 = vadd.f32 %v1266, %v209
    %v1268 = vsel %vm252, %v1267, -inf
    %1269 = vmax.xlane.f32.xlu0 %v1268
    %v1270 = vpop.xlane.xlu0 %1269
    %v1271 = vsub.f32 %v1267, %v1270
    %v1272 = vmul.f32 %v1271, 1.442695
    %v1273 = vpow.pop %v1272
    %v1274 = vsel %vm252, %v1273, 0.0
    %1275 = vadd.xlane.f32.xlu0 %v1274
    %v1276 = vpop.xlane.xlu0 %1275
    %1277 = vrot.lane.b32.xlu0 %v1100, 48
    %v1278 = vpop.permute.xlu0 %1277
    %v1281 = vsel %vm252, %v1273, 0
    %1283 = vmatpush.msra.mxu0 0.0
    %1284 = vmatpush.msra.mxu0 0.0
    %1285 = vmatpush.msra.mxu0 0.0
    %1286 = vmatpush.msra.mxu0 0.0
    %1287 = vmatpush.msra.mxu0 0.0
    %1288 = vmatpush.msra.mxu0 0.0
    %1289 = vmatpush.msra.mxu0 0.0
    %1290 = vmatpush.msra.mxu0 0.0
    %1291 = vmatpush.msra.mxu0 0.0
    %1292 = vmatpush.msra.mxu0 0.0
    %1293 = vmatpush.msra.mxu0 0.0
    %1294 = vmatpush.msra.mxu0 0.0
    %1295 = vmatpush.msra.mxu0 0.0
    %1296 = vmatpush.msra.mxu0 0.0
    %1297 = vmatpush.msra.mxu0 0.0
    %1298 = vmatpush.msra.mxu0 %v1278
    %1299 = vmatmul.f32.gmra.mxu0 %v1281
    %v1300 = vpop.f32.mrf.mxu0
    %v1301 = vadd.f32 0.0, %v1300
    %1302 = vdwg.mxu0
    %v1303 = vrcp.pop %v1276
    %v1304 = vmul.f32 %v1301, %v1303
    %1305 = vrot.lane.b32.xlu0 %v1100, 104
    %v1306 = vpop.permute.xlu0 %1305
    %1307 = vrot.lane.b32.xlu0 %v1100, 72
    %v1308 = vpop.permute.xlu0 %1307
    %v1309 = vsel %vm252, %v1306, 0
    %v1311 = vsel %vm252, %v1308, 0
    %1313 = vmatpush.xpose.msra.mxu0 0.0
    %1314 = vmatpush.xpose.msra.mxu0 0.0
    %1315 = vmatpush.xpose.msra.mxu0 0.0
    %1316 = vmatpush.xpose.msra.mxu0 0.0
    %1317 = vmatpush.xpose.msra.mxu0 0.0
    %1318 = vmatpush.xpose.msra.mxu0 0.0
    %1319 = vmatpush.xpose.msra.mxu0 0.0
    %1320 = vmatpush.xpose.msra.mxu0 0.0
    %1321 = vmatpush.xpose.msra.mxu0 0.0
    %1322 = vmatpush.xpose.msra.mxu0 0.0
    %1323 = vmatpush.xpose.msra.mxu0 0.0
    %1324 = vmatpush.xpose.msra.mxu0 0.0
    %1325 = vmatpush.xpose.msra.mxu0 0.0
    %1326 = vmatpush.xpose.msra.mxu0 0.0
    %1327 = vmatpush.xpose.msra.mxu0 0.0
    %1328 = vmatpush.xpose.msra.mxu0 %v1311
    %1329 = vmatmul.f32.gmra.mxu0 %v1309
    %v1330 = vpop.f32.mrf.mxu0
    %v1331 = vadd.f32 0.0, %v1330
    %1332 = vdwg.mxu0
    %v1333 = vmul.f32 %v1331, 0.35355338
    %v1334 = vadd.f32 %v1333, %v209
    %v1335 = vsel %vm252, %v1334, -inf
    %1336 = vmax.xlane.f32.xlu0 %v1335
    %v1337 = vpop.xlane.xlu0 %1336
    %v1338 = vsub.f32 %v1334, %v1337
    %v1339 = vmul.f32 %v1338, 1.442695
    %v1340 = vpow.pop %v1339
    %v1341 = vsel %vm252, %v1340, 0.0
    %1342 = vadd.xlane.f32.xlu0 %v1341
    %v1343 = vpop.xlane.xlu0 %1342
    %1344 = vrot.lane.b32.xlu0 %v1100, 40
    %v1345 = vpop.permute.xlu0 %1344
    %v1348 = vsel %vm252, %v1340, 0
    %1350 = vmatpush.msra.mxu0 0.0
    %1351 = vmatpush.msra.mxu0 0.0
    %1352 = vmatpush.msra.mxu0 0.0
    %1353 = vmatpush.msra.mxu0 0.0
    %1354 = vmatpush.msra.mxu0 0.0
    %1355 = vmatpush.msra.mxu0 0.0
    %1356 = vmatpush.msra.mxu0 0.0
    %1357 = vmatpush.msra.mxu0 0.0
    %1358 = vmatpush.msra.mxu0 0.0
    %1359 = vmatpush.msra.mxu0 0.0
    %1360 = vmatpush.msra.mxu0 0.0
    %1361 = vmatpush.msra.mxu0 0.0
    %1362 = vmatpush.msra.mxu0 0.0
    %1363 = vmatpush.msra.mxu0 0.0
    %1364 = vmatpush.msra.mxu0 0.0
    %1365 = vmatpush.msra.mxu0 %v1345
    %1366 = vmatmul.f32.gmra.mxu0 %v1348
    %v1367 = vpop.f32.mrf.mxu0
    %v1368 = vadd.f32 0.0, %v1367
    %1369 = vdwg.mxu0
    %v1370 = vrcp.pop %v1343
    %v1371 = vmul.f32 %v1368, %v1370
    %1373 = vrot.lane.b32.xlu0 %v1237, 8
    %v1374 = vpop.permute.xlu0 %1373
    %1377 = vrot.lane.b32.xlu0 %v1304, 16
    %v1378 = vpop.permute.xlu0 %1377
    %1381 = vrot.lane.b32.xlu0 %v1371, 24
    %v1382 = vpop.permute.xlu0 %1381
    %v1384 = vsel %vm252, %v1170, %v1374
    %v1385 = vsel %vm530, %v1384, %v1378
    %v1386 = vsel %vm532, %v1385, %v1382
    %1388 = vrot.lane.b32.xlu0 %v1103, 96
    %v1389 = vpop.permute.xlu0 %1388
    %v1390 = vsel %vm252, %v1103, 0
    %v1392 = vsel %vm252, %v1389, 0
    %1394 = vmatpush.xpose.msra.mxu0 0.0
    %1395 = vmatpush.xpose.msra.mxu0 0.0
    %1396 = vmatpush.xpose.msra.mxu0 0.0
    %1397 = vmatpush.xpose.msra.mxu0 0.0
    %1398 = vmatpush.xpose.msra.mxu0 0.0
    %1399 = vmatpush.xpose.msra.mxu0 0.0
    %1400 = vmatpush.xpose.msra.mxu0 0.0
    %1401 = vmatpush.xpose.msra.mxu0 0.0
    %1402 = vmatpush.xpose.msra.mxu0 0.0
    %1403 = vmatpush.xpose.msra.mxu0 0.0
    %1404 = vmatpush.xpose.msra.mxu0 0.0
    %1405 = vmatpush.xpose.msra.mxu0 0.0
    %1406 = vmatpush.xpose.msra.mxu0 0.0
    %1407 = vmatpush.xpose.msra.mxu0 0.0
    %1408 = vmatpush.xpose.msra.mxu0 0.0
    %1409 = vmatpush.xpose.msra.mxu0 %v1392
    %1410 = vmatmul.f32.gmra.mxu0 %v1390
    %v1411 = vpop.f32.mrf.mxu0
    %v1412 = vadd.f32 0.0, %v1411
    %1413 = vdwg.mxu0
    %v1414 = vmul.f32 %v1412, 0.35355338
    %v1415 = vadd.f32 %v1414, %v211
    %v1416 = vsel %vm252, %v1415, -inf
    %1417 = vmax.xlane.f32.xlu0 %v1416
    %v1418 = vpop.xlane.xlu0 %1417
    %v1419 = vsub.f32 %v1415, %v1418
    %v1420 = vmul.f32 %v1419, 1.442695
    %v1421 = vpow.pop %v1420
    %v1422 = vsel %vm252, %v1421, 0.0
    %1423 = vadd.xlane.f32.xlu0 %v1422
    %v1424 = vpop.xlane.xlu0 %1423
    %1425 = vrot.lane.b32.xlu0 %v1103, 64
    %v1426 = vpop.permute.xlu0 %1425
    %v1429 = vsel %vm252, %v1421, 0
    %1431 = vmatpush.msra.mxu0 0.0
    %1432 = vmatpush.msra.mxu0 0.0
    %1433 = vmatpush.msra.mxu0 0.0
    %1434 = vmatpush.msra.mxu0 0.0
    %1435 = vmatpush.msra.mxu0 0.0
    %1436 = vmatpush.msra.mxu0 0.0
    %1437 = vmatpush.msra.mxu0 0.0
    %1438 = vmatpush.msra.mxu0 0.0
    %1439 = vmatpush.msra.mxu0 0.0
    %1440 = vmatpush.msra.mxu0 0.0
    %1441 = vmatpush.msra.mxu0 0.0
    %1442 = vmatpush.msra.mxu0 0.0
    %1443 = vmatpush.msra.mxu0 0.0
    %1444 = vmatpush.msra.mxu0 0.0
    %1445 = vmatpush.msra.mxu0 0.0
    %1446 = vmatpush.msra.mxu0 %v1426
    %1447 = vmatmul.f32.gmra.mxu0 %v1429
    %v1448 = vpop.f32.mrf.mxu0
    %v1449 = vadd.f32 0.0, %v1448
    %1450 = vdwg.mxu0
    %v1451 = vrcp.pop %v1424
    %v1452 = vmul.f32 %v1449, %v1451
    %1453 = vrot.lane.b32.xlu0 %v1103, 120
    %v1454 = vpop.permute.xlu0 %1453
    %1455 = vrot.lane.b32.xlu0 %v1103, 88
    %v1456 = vpop.permute.xlu0 %1455
    %v1457 = vsel %vm252, %v1454, 0
    %v1459 = vsel %vm252, %v1456, 0
    %1461 = vmatpush.xpose.msra.mxu0 0.0
    %1462 = vmatpush.xpose.msra.mxu0 0.0
    %1463 = vmatpush.xpose.msra.mxu0 0.0
    %1464 = vmatpush.xpose.msra.mxu0 0.0
    %1465 = vmatpush.xpose.msra.mxu0 0.0
    %1466 = vmatpush.xpose.msra.mxu0 0.0
    %1467 = vmatpush.xpose.msra.mxu0 0.0
    %1468 = vmatpush.xpose.msra.mxu0 0.0
    %1469 = vmatpush.xpose.msra.mxu0 0.0
    %1470 = vmatpush.xpose.msra.mxu0 0.0
    %1471 = vmatpush.xpose.msra.mxu0 0.0
    %1472 = vmatpush.xpose.msra.mxu0 0.0
    %1473 = vmatpush.xpose.msra.mxu0 0.0
    %1474 = vmatpush.xpose.msra.mxu0 0.0
    %1475 = vmatpush.xpose.msra.mxu0 0.0
    %1476 = vmatpush.xpose.msra.mxu0 %v1459
    %1477 = vmatmul.f32.gmra.mxu0 %v1457
    %v1478 = vpop.f32.mrf.mxu0
    %v1479 = vadd.f32 0.0, %v1478
    %1480 = vdwg.mxu0
    %v1481 = vmul.f32 %v1479, 0.35355338
    %v1482 = vadd.f32 %v1481, %v211
    %v1483 = vsel %vm252, %v1482, -inf
    %1484 = vmax.xlane.f32.xlu0 %v1483
    %v1485 = vpop.xlane.xlu0 %1484
    %v1486 = vsub.f32 %v1482, %v1485
    %v1487 = vmul.f32 %v1486, 1.442695
    %v1488 = vpow.pop %v1487
    %v1489 = vsel %vm252, %v1488, 0.0
    %1490 = vadd.xlane.f32.xlu0 %v1489
    %v1491 = vpop.xlane.xlu0 %1490
    %1492 = vrot.lane.b32.xlu0 %v1103, 56
    %v1493 = vpop.permute.xlu0 %1492
    %v1496 = vsel %vm252, %v1488, 0
    %1498 = vmatpush.msra.mxu0 0.0
    %1499 = vmatpush.msra.mxu0 0.0
    %1500 = vmatpush.msra.mxu0 0.0
    %1501 = vmatpush.msra.mxu0 0.0
    %1502 = vmatpush.msra.mxu0 0.0
    %1503 = vmatpush.msra.mxu0 0.0
    %1504 = vmatpush.msra.mxu0 0.0
    %1505 = vmatpush.msra.mxu0 0.0
    %1506 = vmatpush.msra.mxu0 0.0
    %1507 = vmatpush.msra.mxu0 0.0
    %1508 = vmatpush.msra.mxu0 0.0
    %1509 = vmatpush.msra.mxu0 0.0
    %1510 = vmatpush.msra.mxu0 0.0
    %1511 = vmatpush.msra.mxu0 0.0
    %1512 = vmatpush.msra.mxu0 0.0
    %1513 = vmatpush.msra.mxu0 %v1493
    %1514 = vmatmul.f32.gmra.mxu0 %v1496
    %v1515 = vpop.f32.mrf.mxu0
    %v1516 = vadd.f32 0.0, %v1515
    %1517 = vdwg.mxu0
    %v1518 = vrcp.pop %v1491
    %v1519 = vmul.f32 %v1516, %v1518
    %1520 = vrot.lane.b32.xlu0 %v1103, 112
    %v1521 = vpop.permute.xlu0 %1520
    %1522 = vrot.lane.b32.xlu0 %v1103, 80
    %v1523 = vpop.permute.xlu0 %1522
    %v1524 = vsel %vm252, %v1521, 0
    %v1526 = vsel %vm252, %v1523, 0
    %1528 = vmatpush.xpose.msra.mxu0 0.0
    %1529 = vmatpush.xpose.msra.mxu0 0.0
    %1530 = vmatpush.xpose.msra.mxu0 0.0
    %1531 = vmatpush.xpose.msra.mxu0 0.0
    %1532 = vmatpush.xpose.msra.mxu0 0.0
    %1533 = vmatpush.xpose.msra.mxu0 0.0
    %1534 = vmatpush.xpose.msra.mxu0 0.0
    %1535 = vmatpush.xpose.msra.mxu0 0.0
    %1536 = vmatpush.xpose.msra.mxu0 0.0
    %1537 = vmatpush.xpose.msra.mxu0 0.0
    %1538 = vmatpush.xpose.msra.mxu0 0.0
    %1539 = vmatpush.xpose.msra.mxu0 0.0
    %1540 = vmatpush.xpose.msra.mxu0 0.0
    %1541 = vmatpush.xpose.msra.mxu0 0.0
    %1542 = vmatpush.xpose.msra.mxu0 0.0
    %1543 = vmatpush.xpose.msra.mxu0 %v1526
    %1544 = vmatmul.f32.gmra.mxu0 %v1524
    %v1545 = vpop.f32.mrf.mxu0
    %v1546 = vadd.f32 0.0, %v1545
    %1547 = vdwg.mxu0
    %v1548 = vmul.f32 %v1546, 0.35355338
    %v1549 = vadd.f32 %v1548, %v211
    %v1550 = vsel %vm252, %v1549, -inf
    %1551 = vmax.xlane.f32.xlu0 %v1550
    %v1552 = vpop.xlane.xlu0 %1551
    %v1553 = vsub.f32 %v1549, %v1552
    %v1554 = vmul.f32 %v1553, 1.442695
    %v1555 = vpow.pop %v1554
    %v1556 = vsel %vm252, %v1555, 0.0
    %1557 = vadd.xlane.f32.xlu0 %v1556
    %v1558 = vpop.xlane.xlu0 %1557
    %1559 = vrot.lane.b32.xlu0 %v1103, 48
    %v1560 = vpop.permute.xlu0 %1559
    %v1563 = vsel %vm252, %v1555, 0
    %1565 = vmatpush.msra.mxu0 0.0
    %1566 = vmatpush.msra.mxu0 0.0
    %1567 = vmatpush.msra.mxu0 0.0
    %1568 = vmatpush.msra.mxu0 0.0
    %1569 = vmatpush.msra.mxu0 0.0
    %1570 = vmatpush.msra.mxu0 0.0
    %1571 = vmatpush.msra.mxu0 0.0
    %1572 = vmatpush.msra.mxu0 0.0
    %1573 = vmatpush.msra.mxu0 0.0
    %1574 = vmatpush.msra.mxu0 0.0
    %1575 = vmatpush.msra.mxu0 0.0
    %1576 = vmatpush.msra.mxu0 0.0
    %1577 = vmatpush.msra.mxu0 0.0
    %1578 = vmatpush.msra.mxu0 0.0
    %1579 = vmatpush.msra.mxu0 0.0
    %1580 = vmatpush.msra.mxu0 %v1560
    %1581 = vmatmul.f32.gmra.mxu0 %v1563
    %v1582 = vpop.f32.mrf.mxu0
    %v1583 = vadd.f32 0.0, %v1582
    %1584 = vdwg.mxu0
    %v1585 = vrcp.pop %v1558
    %v1586 = vmul.f32 %v1583, %v1585
    %1587 = vrot.lane.b32.xlu0 %v1103, 104
    %v1588 = vpop.permute.xlu0 %1587
    %1589 = vrot.lane.b32.xlu0 %v1103, 72
    %v1590 = vpop.permute.xlu0 %1589
    %v1591 = vsel %vm252, %v1588, 0
    %v1593 = vsel %vm252, %v1590, 0
    %1595 = vmatpush.xpose.msra.mxu0 0.0
    %1596 = vmatpush.xpose.msra.mxu0 0.0
    %1597 = vmatpush.xpose.msra.mxu0 0.0
    %1598 = vmatpush.xpose.msra.mxu0 0.0
    %1599 = vmatpush.xpose.msra.mxu0 0.0
    %1600 = vmatpush.xpose.msra.mxu0 0.0
    %1601 = vmatpush.xpose.msra.mxu0 0.0
    %1602 = vmatpush.xpose.msra.mxu0 0.0
    %1603 = vmatpush.xpose.msra.mxu0 0.0
    %1604 = vmatpush.xpose.msra.mxu0 0.0
    %1605 = vmatpush.xpose.msra.mxu0 0.0
    %1606 = vmatpush.xpose.msra.mxu0 0.0
    %1607 = vmatpush.xpose.msra.mxu0 0.0
    %1608 = vmatpush.xpose.msra.mxu0 0.0
    %1609 = vmatpush.xpose.msra.mxu0 0.0
    %1610 = vmatpush.xpose.msra.mxu0 %v1593
    %1611 = vmatmul.f32.gmra.mxu0 %v1591
    %v1612 = vpop.f32.mrf.mxu0
    %v1613 = vadd.f32 0.0, %v1612
    %1614 = vdwg.mxu0
    %v1615 = vmul.f32 %v1613, 0.35355338
    %v1616 = vadd.f32 %v1615, %v211
    %v1617 = vsel %vm252, %v1616, -inf
    %1618 = vmax.xlane.f32.xlu0 %v1617
    %v1619 = vpop.xlane.xlu0 %1618
    %v1620 = vsub.f32 %v1616, %v1619
    %v1621 = vmul.f32 %v1620, 1.442695
    %v1622 = vpow.pop %v1621
    %v1623 = vsel %vm252, %v1622, 0.0
    %1624 = vadd.xlane.f32.xlu0 %v1623
    %v1625 = vpop.xlane.xlu0 %1624
    %1626 = vrot.lane.b32.xlu0 %v1103, 40
    %v1627 = vpop.permute.xlu0 %1626
    %v1630 = vsel %vm252, %v1622, 0
    %1632 = vmatpush.msra.mxu0 0.0
    %1633 = vmatpush.msra.mxu0 0.0
    %1634 = vmatpush.msra.mxu0 0.0
    %1635 = vmatpush.msra.mxu0 0.0
    %1636 = vmatpush.msra.mxu0 0.0
    %1637 = vmatpush.msra.mxu0 0.0
    %1638 = vmatpush.msra.mxu0 0.0
    %1639 = vmatpush.msra.mxu0 0.0
    %1640 = vmatpush.msra.mxu0 0.0
    %1641 = vmatpush.msra.mxu0 0.0
    %1642 = vmatpush.msra.mxu0 0.0
    %1643 = vmatpush.msra.mxu0 0.0
    %1644 = vmatpush.msra.mxu0 0.0
    %1645 = vmatpush.msra.mxu0 0.0
    %1646 = vmatpush.msra.mxu0 0.0
    %1647 = vmatpush.msra.mxu0 %v1627
    %1648 = vmatmul.f32.gmra.mxu0 %v1630
    %v1649 = vpop.f32.mrf.mxu0
    %v1650 = vadd.f32 0.0, %v1649
    %1651 = vdwg.mxu0
    %v1652 = vrcp.pop %v1625
    %v1653 = vmul.f32 %v1650, %v1652
    %1655 = vrot.lane.b32.xlu0 %v1519, 8
    %v1656 = vpop.permute.xlu0 %1655
    %1659 = vrot.lane.b32.xlu0 %v1586, 16
    %v1660 = vpop.permute.xlu0 %1659
    %1663 = vrot.lane.b32.xlu0 %v1653, 24
    %v1664 = vpop.permute.xlu0 %1663
    %v1666 = vsel %vm252, %v1452, %v1656
    %v1667 = vsel %vm530, %v1666, %v1660
    %v1668 = vsel %vm532, %v1667, %v1664
    %s1669 = scalar_lea.vmem %s6, 32
    %v1670 = vld [vmem:[%s1669] sm:$0xff]
    %v1671 = vld [vmem:[%s1669 + $0x8] sm:$0xff]
    %v1672 = vld [vmem:[%s1669 + $0x10] sm:$0xff]
    %v1673 = vld [vmem:[%s1669 + $0x18] sm:$0xff]
    %s1674 = scalar_lea.vmem %s7, 1
    %v1675 = vld [vmem:[%s1674] sm:$0x1]
    %v1677 = vperm.slane %v1675, 0
    %v1680 = vsel %vm146, %v1386, 0
    %v1683 = vsel %vm146, %v1668, 0
    %1685 = vmatpush.msra.mxu0 0.0
    %1686 = vmatpush.msra.mxu0 0.0
    %1687 = vmatpush.msra.mxu0 0.0
    %1688 = vmatpush.msra.mxu0 0.0
    %1689 = vmatpush.msra.mxu0 0.0
    %1690 = vmatpush.msra.mxu0 0.0
    %1691 = vmatpush.msra.mxu0 0.0
    %1692 = vmatpush.msra.mxu0 0.0
    %1693 = vmatpush.msra.mxu0 0.0
    %1694 = vmatpush.msra.mxu0 0.0
    %1695 = vmatpush.msra.mxu0 0.0
    %1696 = vmatpush.msra.mxu0 0.0
    %1697 = vmatpush.msra.mxu0 %v1673
    %1698 = vmatpush.msra.mxu0 %v1672
    %1699 = vmatpush.msra.mxu0 %v1671
    %1700 = vmatpush.msra.mxu0 %v1670
    %1701 = vmatmul.f32.gmra.mxu0 %v1680
    %v1702 = vpop.f32.mrf.mxu0
    %v1703 = vadd.f32 %v1677, %v1702
    %1704 = vmatmul.f32.gmra.mxu0 %v1683
    %v1705 = vpop.f32.mrf.mxu0
    %v1706 = vadd.f32 %v1677, %v1705
    %1707 = vdwg.mxu0
    %v1708 = vadd.f32 %v1703, %v1064
    %v1709 = vadd.f32 %v1706, %v1065
    %s1710 = scalar_lea.vmem [#allocation10], 1
    %v1711 = vld [vmem:[%s1710] sm:$0x1]
    %s1712 = scalar_lea.vmem %s9, 1
    %v1713 = vld [vmem:[%s1712] sm:$0x1]
    %v1714 = vsel %vm146, %v1708, 0.0
    %1715 = vadd.xlane.f32.xlu0 %v1714
    %v1716 = vpop.xlane.xlu0 %1715
    %v1717 = vsel %vm146, %v1709, 0.0
    %1718 = vadd.xlane.f32.xlu0 %v1717
    %v1719 = vpop.xlane.xlu0 %1718
    %v1720 = vmul.f32 %v1716, %v159
    %v1721 = vmul.f32 %v1719, %v159
    %v1722 = vsub.f32 %v1708, %v1720
    %v1723 = vsub.f32 %v1709, %v1721
    %v1724 = vmul.f32 %v1722, %v1722
    %v1725 = vmul.f32 %v1723, %v1723
    %v1726 = vsel %vm146, %v1724, 0.0
    %1727 = vadd.xlane.f32.xlu0 %v1726
    %v1728 = vpop.xlane.xlu0 %1727
    %v1729 = vsel %vm146, %v1725, 0.0
    %1730 = vadd.xlane.f32.xlu0 %v1729
    %v1731 = vpop.xlane.xlu0 %1730
    %v1732 = vmul.f32 %v1728, %v159
    %v1733 = vmul.f32 %v1731, %v159
    %v1734 = vadd.f32 %v1732, 1e-05
    %v1735 = vadd.f32 %v1733, 1e-05
    %v1736 = vrsqrt.pop %v1734
    %v1737 = vmul.f32 %v1736, %v1734
    %v1738 = vmul.f32 %v1737, %v1736
    %v1739 = vmul.f32 0.5, %v1738
    %v1740 = vsub.f32 1.5, %v1739
    %v1741 = vmul.f32 %v1736, %v1740
    %vm1742 = vweird.f32 %v1734
    %vm1743 = vweird.f32 %v1736
    %vm1744 = vmor %vm1742, %vm1743
    %v1745 = vsel %vm1744, %v1736, %v1741
    %v1746 = vrsqrt.pop %v1735
    %v1747 = vmul.f32 %v1746, %v1735
    %v1748 = vmul.f32 %v1747, %v1746
    %v1749 = vmul.f32 0.5, %v1748
    %v1750 = vsub.f32 1.5, %v1749
    %v1751 = vmul.f32 %v1746, %v1750
    %vm1752 = vweird.f32 %v1735
    %vm1753 = vweird.f32 %v1746
    %vm1754 = vmor %vm1752, %vm1753
    %v1755 = vsel %vm1754, %v1746, %v1751
    %v1756 = vmul.f32 %v1722, %v1745
    %v1757 = vmul.f32 %v1723, %v1755
    %v1759 = vperm.slane %v1711, 0
    %v1761 = vmul.f32 %v1756, %v1759
    %v1762 = vmul.f32 %v1757, %v1759
    %v1764 = vperm.slane %v1713, 0
    %v1766 = vadd.f32 %v1761, %v1764
    %v1767 = vadd.f32 %v1762, %v1764
    %s1768 = scalar_lea.vmem %s10, 32
    %v1769 = vld [vmem:[%s1768] sm:$0xff]
    %v1770 = vld [vmem:[%s1768 + $0x8] sm:$0xff]
    %v1771 = vld [vmem:[%s1768 + $0x10] sm:$0xff]
    %v1772 = vld [vmem:[%s1768 + $0x18] sm:$0xff]
    %s1773 = scalar_lea.vmem %s11, 1
    %v1774 = vld [vmem:[%s1773] sm:$0x1]
    %v1776 = vperm.slane %v1774, 0
    %v1779 = vsel %vm146, %v1766, 0
    %v1782 = vsel %vm146, %v1767, 0
    %1784 = vmatpush.msra.mxu0 0.0
    %1785 = vmatpush.msra.mxu0 0.0
    %1786 = vmatpush.msra.mxu0 0.0
    %1787 = vmatpush.msra.mxu0 0.0
    %1788 = vmatpush.msra.mxu0 0.0
    %1789 = vmatpush.msra.mxu0 0.0
    %1790 = vmatpush.msra.mxu0 0.0
    %1791 = vmatpush.msra.mxu0 0.0
    %1792 = vmatpush.msra.mxu0 0.0
    %1793 = vmatpush.msra.mxu0 0.0
    %1794 = vmatpush.msra.mxu0 0.0
    %1795 = vmatpush.msra.mxu0 0.0
    %1796 = vmatpush.msra.mxu0 %v1772
    %1797 = vmatpush.msra.mxu0 %v1771
    %1798 = vmatpush.msra.mxu0 %v1770
    %1799 = vmatpush.msra.mxu0 %v1769
    %1800 = vmatmul.f32.gmra.mxu0 %v1779
    %v1801 = vpop.f32.mrf.mxu0
    %v1802 = vadd.f32 %v1776, %v1801
    %1803 = vmatmul.f32.gmra.mxu0 %v1782
    %v1804 = vpop.f32.mrf.mxu0
    %v1805 = vadd.f32 %v1776, %v1804
    %1806 = vdwg.mxu0
    %v1807 = vmul.f32 %v1802, 0.5
    %v1808 = vmul.f32 %v1805, 0.5
    %v1809 = vmul.f32 %v1802, 0.044715
    %v1810 = vmul.f32 %v1805, 0.044715
    %v1811 = vmul.f32 %v1809, %v1802
    %v1812 = vmul.f32 %v1810, %v1805
    %v1813 = vmul.f32 %v1811, %v1802
    %v1814 = vmul.f32 %v1812, %v1805
    %v1815 = vadd.f32 %v1802, %v1813
    %v1816 = vadd.f32 %v1805, %v1814
    %v1817 = vmul.f32 %v1815, 0.7978846
    %v1818 = vmul.f32 %v1816, 0.7978846
    %v1819 = vtanh.pop %v1817
    %v1820 = vtanh.pop %v1818
    %v1821 = vadd.f32 %v1819, 1.0
    %v1822 = vadd.f32 %v1820, 1.0
    %v1823 = vmul.f32 %v1807, %v1821
    %v1824 = vmul.f32 %v1808, %v1822
    %s1825 = scalar_lea.vmem %s12, 64
    %v1826 = vld [vmem:[%s1825] sm:$0xff]
    %v1827 = vld [vmem:[%s1825 + $0x8] sm:$0xff]
    %v1828 = vld [vmem:[%s1825 + $0x10] sm:$0xff]
    %v1829 = vld [vmem:[%s1825 + $0x18] sm:$0xff]
    %v1830 = vld [vmem:[%s1825 + $0x20] sm:$0xff]
    %v1831 = vld [vmem:[%s1825 + $0x28] sm:$0xff]
    %v1832 = vld [vmem:[%s1825 + $0x30] sm:$0xff]
    %v1833 = vld [vmem:[%s1825 + $0x38] sm:$0xff]
    %s1834 = scalar_lea.vmem %s13, 1
    %v1835 = vld [vmem:[%s1834] sm:$0x1]
    %v1837 = vperm.slane %v1835, 0
    %v1840 = vsel %vm978, %v1823, 0
    %v1843 = vsel %vm978, %v1824, 0
    %1845 = vmatpush.msra.mxu0 0.0
    %1846 = vmatpush.msra.mxu0 0.0
    %1847 = vmatpush.msra.mxu0 0.0
    %1848 = vmatpush.msra.mxu0 0.0
    %1849 = vmatpush.msra.mxu0 0.0
    %1850 = vmatpush.msra.mxu0 0.0
    %1851 = vmatpush.msra.mxu0 0.0
    %1852 = vmatpush.msra.mxu0 0.0
    %1853 = vmatpush.msra.mxu0 %v1833
    %1854 = vmatpush.msra.mxu0 %v1832
    %1855 = vmatpush.msra.mxu0 %v1831
    %1856 = vmatpush.msra.mxu0 %v1830
    %1857 = vmatpush.msra.mxu0 %v1829
    %1858 = vmatpush.msra.mxu0 %v1828
    %1859 = vmatpush.msra.mxu0 %v1827
    %1860 = vmatpush.msra.mxu0 %v1826
    %1861 = vmatmul.f32.gmra.mxu0 %v1840
    %v1862 = vpop.f32.mrf.mxu0
    %v1863 = vadd.f32 %v1837, %v1862
    %1864 = vmatmul.f32.gmra.mxu0 %v1843
    %v1865 = vpop.f32.mrf.mxu0
    %v1866 = vadd.f32 %v1837, %v1865
    %1867 = vdwg.mxu0
    %v1868 = vadd.f32 %v1863, %v1766
    %v1869 = vadd.f32 %v1866, %v1767
    %s1870 = scalar_lea.vmem [#allocation11], 1
    %v1871 = vld [vmem:[%s1870] sm:$0x1]
    %s1872 = scalar_lea.vmem %s15, 1
    %v1873 = vld [vmem:[%s1872] sm:$0x1]
    %v1874 = vsel %vm146, %v1868, 0.0
    %1875 = vadd.xlane.f32.xlu0 %v1874
    %v1876 = vpop.xlane.xlu0 %1875
    %v1877 = vsel %vm146, %v1869, 0.0
    %1878 = vadd.xlane.f32.xlu0 %v1877
    %v1879 = vpop.xlane.xlu0 %1878
    %v1880 = vmul.f32 %v1876, %v159
    %v1881 = vmul.f32 %v1879, %v159
    %v1882 = vsub.f32 %v1868, %v1880
    %v1883 = vsub.f32 %v1869, %v1881
    %v1884 = vmul.f32 %v1882, %v1882
    %v1885 = vmul.f32 %v1883, %v1883
    %v1886 = vsel %vm146, %v1884, 0.0
    %1887 = vadd.xlane.f32.xlu0 %v1886
    %v1888 = vpop.xlane.xlu0 %1887
    %v1889 = vsel %vm146, %v1885, 0.0
    %1890 = vadd.xlane.f32.xlu0 %v1889
    %v1891 = vpop.xlane.xlu0 %1890
    %v1892 = vmul.f32 %v1888, %v159
    %v1893 = vmul.f32 %v1891, %v159
    %v1894 = vadd.f32 %v1892, 1e-05
    %v1895 = vadd.f32 %v1893, 1e-05
    %v1896 = vrsqrt.pop %v1894
    %v1897 = vmul.f32 %v1896, %v1894
    %v1898 = vmul.f32 %v1897, %v1896
    %v1899 = vmul.f32 0.5, %v1898
    %v1900 = vsub.f32 1.5, %v1899
    %v1901 = vmul.f32 %v1896, %v1900
    %vm1902 = vweird.f32 %v1894
    %vm1903 = vweird.f32 %v1896
    %vm1904 = vmor %vm1902, %vm1903
    %v1905 = vsel %vm1904, %v1896, %v1901
    %v1906 = vrsqrt.pop %v1895
    %v1907 = vmul.f32 %v1906, %v1895
    %v1908 = vmul.f32 %v1907, %v1906
    %v1909 = vmul.f32 0.5, %v1908
    %v1910 = vsub.f32 1.5, %v1909
    %v1911 = vmul.f32 %v1906, %v1910
    %vm1912 = vweird.f32 %v1895
    %vm1913 = vweird.f32 %v1906
    %vm1914 = vmor %vm1912, %vm1913
    %v1915 = vsel %vm1914, %v1906, %v1911
    %v1916 = vmul.f32 %v1882, %v1905
    %v1917 = vmul.f32 %v1883, %v1915
    %v1919 = vperm.slane %v1871, 0
    %v1921 = vmul.f32 %v1916, %v1919
    %v1922 = vmul.f32 %v1917, %v1919
    %v1924 = vperm.slane %v1873, 0
    %v1926 = vadd.f32 %v1921, %v1924
    %v1927 = vadd.f32 %v1922, %v1924
    %v1929 = vrot.slane %v1927, 7
    %vm1931 = vcmask 1040384
    %v1932 = vsel %vm1931, %v1926, %v1929
    %vm1933 = vcmask 254976
    %1934 = vst.msk [vmem:[#allocation13] sm:$0x3] %vm1933, %v1932
    // Predicated region
    $region90: #{tpu_custom_call.1} parent=1 // pred_check
      _
    $region91: #{tpu_custom_call.1} parent=1 // pred_check_branch
      %1936 = sbr.rel (0) target = $region93
    $region92: #{tpu_custom_call.1} parent=1 // pred_region
      %1938 = vsyncadd [#allocation4], 0
      %s1940 = sshll.u32 [#allocation13], 4
      %s1941 = int_to_ptr.vmem [resolvable:$true] %s1940
      %s1942 = sshll.u32 %s16, 4
      %s1943 = int_to_ptr.hbm [resolvable:$true] %s1942
      %1945 = dma.vmem_to_hbm [thread:$0]  %s1941, 32, %s1943, [#allocation4]
    $region93: #{tpu_custom_call.1} parent=1 // pred_fallthru
      _
    // Predicated region
    $region94: #{tpu_custom_call.1} parent=1 // pred_check
      _
    $region95: #{tpu_custom_call.1} parent=1 // pred_check_branch
      %1947 = sbr.rel (0) target = $region97
    $region96: #{tpu_custom_call.1} parent=1 // pred_region
      %1949 = dma.done [#allocation4], 32
    $region97: #{tpu_custom_call.1} parent=1 // pred_fallthru
      _
    %1950 = vsyncpa [#allocation3], 1
    %1951 = vsyncpa [#allocation6], 1
    %1952 = vsyncpa [#allocation9], 1
    %1953 = vsyncpa [#allocation12], 1
    %1954 = vsyncpa [#allocation4], 1

</llo_original>
